<compile_context>
chip_gen: v5e
topology: v5e:2x2
jax: 0.10.0
libtpu: 0.0.40
codegen_flags: <defaults>
</compile_context>

<pallas_src>
import math
import functools

import jax
import jax.numpy as jnp
from jax import lax
from jax.experimental import pallas as pl
from jax.experimental.pallas import tpu as pltpu

# MXU operand dtype.  f32 keeps the kernel tightly comparable to the f32
# reference (1e-4 check).  Set to jnp.bfloat16 on v5e/v6e/v7x for higher MXU
# throughput; the check tolerance relaxes automatically below.
MXU_DTYPE = jnp.float32


# --------------------------------------------------------- param preparation --

def prepare_params(params, *, d_model, hideen, head):
    """One-time parameter prep (call OUTSIDE the jitted forward).

    * Stacks Q/K/V 1x1-conv weights into one matrix and folds 1/sqrt(d_k) into
      the Q projection (so the kernel never scales the (L, L) score matrix).
    * Pre-splits the output-conv weight so the fused tail can contract directly
      against the attention output held in (head, d_k, L) layout, absorbing the
      PyTorch (d_model, L) -> (hideen, HW) flat-view without any reshape.
    """
    assert d_model % head == 0
    assert hideen % d_model == 0, "split-weight tail assumes hideen % d_model == 0"
    d_k = d_model // head
    r = hideen // d_model                      # = L / HW
    scale = 1.0 / math.sqrt(d_k)

    wqkv = jnp.concatenate([params["wq"] * scale, params["wk"], params["wv"]], axis=0)
    bqkv = jnp.concatenate([params["bq"] * scale, params["bk"], params["bv"]], axis=0)

    wo = params["wo"]
    # wo_hd[h, u][:, dkk] = wo[:, (h*d_k + dkk) * r + u]
    wo_hd = jnp.stack(
        [jnp.stack([wo[:, (jnp.arange(d_k) + h * d_k) * r + u] for u in range(r)],
                   axis=0) for h in range(head)],
        axis=0)                                # (head, r, hideen, d_k)

    return {
        "wqkv": wqkv,                          # (3*hideen, d_model)
        "bqkv": bqkv.reshape(-1, 1),           # (3*hideen, 1)
        "wo_hd": wo_hd,                        # (head, r, hideen, d_k)
        "wo": wo,                              # (hideen, hideen)
        "bo": params["bo"].reshape(-1, 1),     # (hideen, 1)
    }


# ----------------------------------------------------------- QKV projection --

def _qkv_kernel(x_ref, w_ref, b_ref, o_ref):
    # x_ref: (1, Cin, HW)   w_ref: (3*hideen, Cin)   b_ref: (3*hideen, 1)
    x = x_ref[0].astype(MXU_DTYPE)
    w = w_ref[...].astype(MXU_DTYPE)
    o_ref[0] = jnp.dot(w, x, preferred_element_type=jnp.float32) + b_ref[...]


def qkv_projection(x, wqkv, bqkv):
    """Stacked 1x1 conv: x (B, Cin, HW) -> (B, 3*hideen, HW)."""
    B, Cin, HW = x.shape
    Cout = wqkv.shape[0]
    return pl.pallas_call(
        _qkv_kernel,
        out_shape=jax.ShapeDtypeStruct((B, Cout, HW), jnp.float32),
        grid=(B,),
        in_specs=[
            pl.BlockSpec((1, Cin, HW), lambda b: (b, 0, 0)),
            pl.BlockSpec((Cout, Cin), lambda b: (0, 0)),
            pl.BlockSpec((Cout, 1), lambda b: (0, 0)),
        ],
        out_specs=pl.BlockSpec((1, Cout, HW), lambda b: (b, 0, 0)),
        compiler_params=pltpu.CompilerParams(dimension_semantics=("parallel",)),
    )(x, wqkv, bqkv)


# ------------------------------------- fused attention + conv/IN/conv tail --

def _attn_tail_kernel(q_ref, k_ref, v_ref, wo_hd_ref, wo_ref, bo_ref,
                      o_ref, a_ref, *, d_k, block_q, hw, r, n_head):
    h = pl.program_id(1)
    qb = pl.program_id(2)

    # ---- attention for (head h, query block qb).  1/sqrt(d_k) is pre-folded
    #      into the Q weights; scores tile is only (block_q, L).
    q = q_ref[0, 0].astype(MXU_DTYPE)                       # (d_k, block_q)
    k = k_ref[0, 0].astype(MXU_DTYPE)                       # (d_k, L)
    v = v_ref[0, 0].astype(MXU_DTYPE)                       # (d_k+1, L); last row = ones

    s = lax.dot_general(q, k, (((0,), (0,)), ((), ())),
                        preferred_element_type=jnp.float32)  # (block_q, L)
    m = jnp.max(s, axis=-1, keepdims=True)
    e = jnp.exp(s - m).astype(MXU_DTYPE)                     # unnormalized probs
    # One matmul yields numerator rows (0..d_k-1) and the softmax denominator
    # (the appended ones-row of V), lane-major in the query index.
    nd = lax.dot_general(v, e, (((1,), (1,)), ((), ())),
                         preferred_element_type=jnp.float32)  # (d_k+1, block_q)
    blk = nd[:d_k, :] * pl.reciprocal(nd[d_k:d_k + 1, :], approx=False)

    q_start = pl.multiple_of(qb * block_q, block_q)
    a_ref[h, :, pl.ds(q_start, block_q)] = blk               # a[h, d_k, L] accumulator

    # ---- fused tail: conv1x1 -> InstanceNorm2d(eps=1e-5, affine=False) -> conv1x1
    last = (h == pl.num_programs(1) - 1) & (qb == pl.num_programs(2) - 1)

    @pl.when(last)
    def _():
        bo = bo_ref[...]                                     # (hideen, 1)
        t = bo
        # (head, d_k, L) flat == (hideen, HW) flat of the PyTorch view chain;
        # contract against pre-split output weights instead of reshaping.
        for u in range(r):
            for hh in range(n_head):
                t = t + jnp.dot(
                    wo_hd_ref[hh, u].astype(MXU_DTYPE),                       # (hideen, d_k)
                    a_ref[hh, :, u * hw:(u + 1) * hw].astype(MXU_DTYPE),      # (d_k, HW)
                    preferred_element_type=jnp.float32)
        mean = jnp.mean(t, axis=-1, keepdims=True)
        var = jnp.mean(t * t, axis=-1, keepdims=True) - mean * mean  # biased, like PyTorch IN
        tn = ((t - mean) * lax.rsqrt(var + 1e-5)).astype(MXU_DTYPE)
        o_ref[0] = jnp.dot(wo_ref[...].astype(MXU_DTYPE), tn,
                           preferred_element_type=jnp.float32) + bo


def attention_out_stage(q_t, k_t, v_aug, wo_hd, wo, bo, *, hw, block_q=128):
    """q_t/k_t: (B, head, d_k, L); v_aug: (B, head, d_k+1, L) with a trailing
    ones-row.  Returns the module output in (B, hideen, HW) layout."""
    B, H, Dk, L = q_t.shape
    hideen = wo.shape[0]
    r = wo_hd.shape[1]
    block_q = min(block_q, L)
    assert L % block_q == 0
    n_qb = L // block_q

    kernel = functools.partial(_attn_tail_kernel, d_k=Dk, block_q=block_q,
                               hw=hw, r=r, n_head=H)
    return pl.pallas_call(
        kernel,
        out_shape=jax.ShapeDtypeStruct((B, hideen, hw), jnp.float32),
        grid=(B, H, n_qb),
        in_specs=[
            pl.BlockSpec((1, 1, Dk, block_q), lambda b, h, qb: (b, h, 0, qb)),
            pl.BlockSpec((1, 1, Dk, L), lambda b, h, qb: (b, h, 0, 0)),
            pl.BlockSpec((1, 1, Dk + 1, L), lambda b, h, qb: (b, h, 0, 0)),
            pl.BlockSpec((H, r, hideen, Dk), lambda b, h, qb: (0, 0, 0, 0)),
            pl.BlockSpec((hideen, hideen), lambda b, h, qb: (0, 0)),
            pl.BlockSpec((hideen, 1), lambda b, h, qb: (0, 0)),
        ],
        out_specs=pl.BlockSpec((1, hideen, hw), lambda b, h, qb: (b, 0, 0)),
        scratch_shapes=[pltpu.VMEM((H, Dk, L), jnp.float32)],
        compiler_params=pltpu.CompilerParams(
            dimension_semantics=("parallel", "arbitrary", "arbitrary")),
    )(q_t, k_t, v_aug, wo_hd, wo, bo)


# ------------------------------------------------------------------ forward --

def self_attention_forward(x, prep, *, d_model, hideen, head, img_h, img_w):
    """x: (B, d_model, H, W) NCHW.  prep: output of prepare_params.
    Returns (B, hideen, img_h, img_w)."""
    B, C, H, W = x.shape
    assert C == d_model and d_model % head == 0
    assert H * W == img_h * img_w, "view(B, -1, img_h, img_w) needs matching spatial size"
    assert hideen % d_model == 0
    d_k = d_model // head
    HW = H * W
    assert (hideen * HW) % d_model == 0
    L = (hideen * HW) // d_model              # PyTorch's view(B, -1, head, d_k)

    x2 = x.reshape(B, C, HW)
    qkv = qkv_projection(x2, prep["wqkv"], prep["bqkv"])       # (B, 3*hideen, HW)

    # The .view(B,-1,head,d_k).transpose(1,2) permutation of the module, plus
    # moving d_k ahead of L so the attention kernel sees lane-dense (d_k, L)
    # operands.  Kept on the XLA side (tiny, ~100 KB stride-8 lane interleave);
    # it is the only XLA op between the two fused kernels.
    qkv_t = qkv.reshape(B, 3, L, d_model)
    qkv_t = jnp.transpose(qkv_t, (0, 1, 3, 2)).reshape(B, 3, head, d_k, L)
    q_t, k_t, v_t = qkv_t[:, 0], qkv_t[:, 1], qkv_t[:, 2]      # each (B, head, d_k, L)
    # Append a ones-row to V: the PV matmul then also produces the softmax denominator.
    v_aug = jnp.concatenate([v_t, jnp.ones((B, head, 1, L), v_t.dtype)], axis=2)

    out = attention_out_stage(q_t, k_t, v_aug, prep["wo_hd"], prep["wo"],
                              prep["bo"], hw=HW)               # (B, hideen, HW)
    return out.reshape(B, hideen, img_h, img_w)


# ---------------------------------------------------------------- reference --

def _reference_forward(x, params, *, d_model, hideen, head, img_h, img_w):
    B, C, H, W = x.shape
    d_k = d_model // head
    L = (hideen * H * W) // d_model

    def conv(t, w, b):
        return jnp.einsum("oc,bchw->bohw", w, t) + b[None, :, None, None]

    q = conv(x, params["wq"], params["bq"])
    k = conv(x, params["wk"], params["bk"])
    v = conv(x, params["wv"], params["bv"])

    def split(t):
        return jnp.transpose(t.reshape(B, L, head, d_k), (0, 2, 1, 3))

    q, k, v = split(q), split(k), split(v)
    s = jnp.einsum("bhld,bhmd->bhlm", q, k) / math.sqrt(d_k)
    p = jax.nn.softmax(s, axis=-1)
    a = jnp.einsum("bhlm,bhmd->bhld", p, v)
    a = jnp.transpose(a, (0, 2, 1, 3)).reshape(B, L, d_model)
    a = jnp.transpose(a, (0, 2, 1)).reshape(B, hideen, img_h, img_w)
    t = conv(a, params["wo"], params["bo"])
    mean = t.mean(axis=(2, 3), keepdims=True)
    var = ((t - mean) ** 2).mean(axis=(2, 3), keepdims=True)
    tn = (t - mean) / jnp.sqrt(var + 1e-5)
    return conv(tn, params["wo"], params["bo"])


# --------------------------------------------------------------------- main --

if __name__ == "__main__":
    # d_model=8, hideen=16, head=2, img 16x16 -> HW=256 (lane-dense), L=512.
    B, d_model, hideen, head = 2, 8, 16, 2
    img_h = img_w = 16

    key = jax.random.PRNGKey(0)
    ks = jax.random.split(key, 9)
    params = {
        "wq": 0.1 * jax.random.normal(ks[0], (hideen, d_model), jnp.float32),
        "bq": 0.1 * jax.random.normal(ks[1], (hideen,), jnp.float32),
        "wk": 0.1 * jax.random.normal(ks[2], (hideen, d_model), jnp.float32),
        "bk": 0.1 * jax.random.normal(ks[3], (hideen,), jnp.float32),
        "wv": 0.1 * jax.random.normal(ks[4], (hideen, d_model), jnp.float32),
        "bv": 0.1 * jax.random.normal(ks[5], (hideen,), jnp.float32),
        "wo": 0.1 * jax.random.normal(ks[6], (hideen, hideen), jnp.float32),
        "bo": 0.1 * jax.random.normal(ks[7], (hideen,), jnp.float32),
    }
    x = jax.random.normal(ks[8], (B, d_model, img_h, img_w), jnp.float32)

    # One-time param prep (weight stacking / scale folding / output-conv split).
    prep = prepare_params(params, d_model=d_model, hideen=hideen, head=head)

    fwd = jax.jit(functools.partial(self_attention_forward, d_model=d_model,
                                    hideen=hideen, head=head,
                                    img_h=img_h, img_w=img_w))
    out = jax.block_until_ready(fwd(x, prep))

    ref = _reference_forward(x, params, d_model=d_model, hideen=hideen,
                             head=head, img_h=img_h, img_w=img_w)
    assert out.shape == (B, hideen, img_h, img_w)
    tol = 1e-4 if MXU_DTYPE == jnp.float32 else 2e-2
    assert jnp.allclose(out, ref, rtol=tol, atol=tol), "mismatch vs pure-JAX reference"

    print("KERNEL_OK")
</pallas_src>

<mosaic_0001>
module attributes {stable_mosaic.version = 11 : i64} {
  func.func @_qkv_kernel(%arg0: i32, %arg1: memref<1x8x256xf32, #tpu.memory_space<vmem>>, %arg2: memref<48x8xf32, #tpu.memory_space<vmem>>, %arg3: memref<48x1xf32, #tpu.memory_space<vmem>>, %arg4: memref<1x48x256xf32, #tpu.memory_space<vmem>>) attributes {dimension_semantics = [#tpu.dimension_semantics<parallel>], iteration_bounds = array<i64: 2>, scalar_prefetch = 0 : i64, scratch_operands = 0 : i64, tpu.core_type = #tpu.core_type<tc>, window_params = [{transform_indices = @transform_0, window_bounds = array<i64: 1, 8, 256>}, {pipeline_mode = #tpu.pipeline_mode<synchronous>, transform_indices = @transform_1, window_bounds = array<i64: 48, 8>}, {pipeline_mode = #tpu.pipeline_mode<synchronous>, transform_indices = @transform_2, window_bounds = array<i64: 48, 1>}, {transform_indices = @transform_3, window_bounds = array<i64: 1, 48, 256>}]} {
    %c0 = arith.constant 0 : index
    %c0_0 = arith.constant 0 : index
    %c0_1 = arith.constant 0 : index
    %0 = vector.load %arg1[%c0, %c0_0, %c0_1] : memref<1x8x256xf32, #tpu.memory_space<vmem>>, vector<1x8x256xf32>
    %1 = vector.shape_cast %0 : vector<1x8x256xf32> to vector<8x256xf32>
    %c0_2 = arith.constant 0 : index
    %c0_3 = arith.constant 0 : index
    %2 = vector.load %arg2[%c0_2, %c0_3] : memref<48x8xf32, #tpu.memory_space<vmem>>, vector<48x8xf32>
    %cst = arith.constant dense<0.000000e+00> : vector<48x256xf32>
    %3 = tpu.matmul %2, %1, %cst {dimension_numbers = #tpu.dot_dimension_numbers<[1], [0], [0], [1], [0, 0, 1, 1], [], []>} : vector<48x8xf32>, vector<8x256xf32>, vector<48x256xf32> -> vector<48x256xf32>
    %c0_4 = arith.constant 0 : index
    %c0_5 = arith.constant 0 : index
    %4 = vector.load %arg3[%c0_4, %c0_5] : memref<48x1xf32, #tpu.memory_space<vmem>>, vector<48x1xf32>
    %5 = vector.broadcast %4 : vector<48x1xf32> to vector<48x256xf32>
    %6 = arith.addf %3, %5 : vector<48x256xf32>
    %c0_6 = arith.constant 0 : index
    %c0_7 = arith.constant 0 : index
    %c0_8 = arith.constant 0 : index
    %7 = vector.load %arg4[%c0_6, %c0_7, %c0_8] : memref<1x48x256xf32, #tpu.memory_space<vmem>>, vector<1x48x256xf32>
    %8 = vector.shape_cast %7 : vector<1x48x256xf32> to vector<48x256xf32>
    %9 = vector.shape_cast %6 : vector<48x256xf32> to vector<1x48x256xf32>
    tpu.vector_store %arg4[%c0_6, %c0_7, %c0_8], %9 {strides = array<i32>} : memref<1x48x256xf32, #tpu.memory_space<vmem>>, vector<1x48x256xf32>,
    return
  }
  func.func @transform_0(%arg0: i32) -> (i32, i32, i32) {
    %c0_i32 = arith.constant 0 : i32
    %c0_i32_0 = arith.constant 0 : i32
    %c0_i32_1 = arith.constant 0 : i32
    return %arg0, %c0_i32, %c0_i32_0 : i32, i32, i32
  }
  func.func @transform_1(%arg0: i32) -> (i32, i32) {
    %c0_i32 = arith.constant 0 : i32
    %c0_i32_0 = arith.constant 0 : i32
    %c0_i32_1 = arith.constant 0 : i32
    return %c0_i32, %c0_i32_0 : i32, i32
  }
  func.func @transform_2(%arg0: i32) -> (i32, i32) {
    %c0_i32 = arith.constant 0 : i32
    %c0_i32_0 = arith.constant 0 : i32
    %c0_i32_1 = arith.constant 0 : i32
    return %c0_i32, %c0_i32_0 : i32, i32
  }
  func.func @transform_3(%arg0: i32) -> (i32, i32, i32) {
    %c0_i32 = arith.constant 0 : i32
    %c0_i32_0 = arith.constant 0 : i32
    %c0_i32_1 = arith.constant 0 : i32
    return %arg0, %c0_i32, %c0_i32_0 : i32, i32, i32
  }
}

module attributes {stable_mosaic.version = 11 : i64} {
  func.func @_attn_tail_kernel(%arg0: i32, %arg1: i32, %arg2: i32, %arg3: memref<1x1x4x128xf32, #tpu.memory_space<vmem>>, %arg4: memref<1x1x4x512xf32, #tpu.memory_space<vmem>>, %arg5: memref<1x1x5x512xf32, #tpu.memory_space<vmem>>, %arg6: memref<2x2x16x4xf32, #tpu.memory_space<vmem>>, %arg7: memref<16x16xf32, #tpu.memory_space<vmem>>, %arg8: memref<16x1xf32, #tpu.memory_space<vmem>>, %arg9: memref<1x16x256xf32, #tpu.memory_space<vmem>>, %arg10: memref<2x4x512xf32, #tpu.memory_space<vmem>>) attributes {dimension_semantics = [#tpu.dimension_semantics<parallel>, #tpu.dimension_semantics<arbitrary>, #tpu.dimension_semantics<arbitrary>], iteration_bounds = array<i64: 2, 2, 4>, scalar_prefetch = 0 : i64, scratch_operands = 1 : i64, tpu.core_type = #tpu.core_type<tc>, window_params = [{transform_indices = @transform_0, window_bounds = array<i64: 1, 1, 4, 128>}, {transform_indices = @transform_1, window_bounds = array<i64: 1, 1, 4, 512>}, {transform_indices = @transform_2, window_bounds = array<i64: 1, 1, 5, 512>}, {pipeline_mode = #tpu.pipeline_mode<synchronous>, transform_indices = @transform_3, window_bounds = array<i64: 2, 2, 16, 4>}, {pipeline_mode = #tpu.pipeline_mode<synchronous>, transform_indices = @transform_4, window_bounds = array<i64: 16, 16>}, {pipeline_mode = #tpu.pipeline_mode<synchronous>, transform_indices = @transform_5, window_bounds = array<i64: 16, 1>}, {transform_indices = @transform_6, window_bounds = array<i64: 1, 16, 256>}]} {
    %c0 = arith.constant 0 : index
    %c0_0 = arith.constant 0 : index
    %c0_1 = arith.constant 0 : index
    %c0_2 = arith.constant 0 : index
    %0 = vector.load %arg3[%c0, %c0_0, %c0_1, %c0_2] : memref<1x1x4x128xf32, #tpu.memory_space<vmem>>, vector<1x1x4x128xf32>
    %1 = vector.shape_cast %0 : vector<1x1x4x128xf32> to vector<4x128xf32>
    %c0_3 = arith.constant 0 : index
    %c0_4 = arith.constant 0 : index
    %c0_5 = arith.constant 0 : index
    %c0_6 = arith.constant 0 : index
    %2 = vector.load %arg4[%c0_3, %c0_4, %c0_5, %c0_6] : memref<1x1x4x512xf32, #tpu.memory_space<vmem>>, vector<1x1x4x512xf32>
    %3 = vector.shape_cast %2 : vector<1x1x4x512xf32> to vector<4x512xf32>
    %c0_7 = arith.constant 0 : index
    %c0_8 = arith.constant 0 : index
    %c0_9 = arith.constant 0 : index
    %c0_10 = arith.constant 0 : index
    %4 = vector.load %arg5[%c0_7, %c0_8, %c0_9, %c0_10] : memref<1x1x5x512xf32, #tpu.memory_space<vmem>>, vector<1x1x5x512xf32>
    %5 = vector.shape_cast %4 : vector<1x1x5x512xf32> to vector<5x512xf32>
    %cst = arith.constant dense<0.000000e+00> : vector<128x512xf32>
    %6 = tpu.matmul %1, %3, %cst {dimension_numbers = #tpu.dot_dimension_numbers<[0], [0], [1], [1], [0, 1, 1, 1], [], []>} : vector<4x128xf32>, vector<4x512xf32>, vector<128x512xf32> -> vector<128x512xf32>
    %cst_11 = arith.constant dense<0xFF800000> : vector<128xf32>
    %7 = vector.multi_reduction <maximumf>, %6, %cst_11 [1] : vector<128x512xf32> to vector<128xf32>
    %8 = vector.shape_cast %7 : vector<128xf32> to vector<128x1xf32>
    %9 = vector.broadcast %8 : vector<128x1xf32> to vector<128x512xf32>
    %10 = arith.subf %6, %9 : vector<128x512xf32>
    %11 = math.exp %10 : vector<128x512xf32>
    %cst_12 = arith.constant dense<0.000000e+00> : vector<5x128xf32>
    %12 = tpu.matmul %5, %11, %cst_12 {dimension_numbers = #tpu.dot_dimension_numbers<[1], [1], [0], [0], [0, 0, 1, 0], [], []>} : vector<5x512xf32>, vector<128x512xf32>, vector<5x128xf32> -> vector<5x128xf32>
    %13 = vector.extract_strided_slice %12 {offsets = [0, 0], sizes = [4, 128], strides = [1, 1]} : vector<5x128xf32> to vector<4x128xf32>
    %14 = vector.extract_strided_slice %12 {offsets = [4, 0], sizes = [1, 128], strides = [1, 1]} : vector<5x128xf32> to vector<1x128xf32>
    %15 = tpu.reciprocal %14 : vector<1x128xf32> -> vector<1x128xf32>
    %16 = vector.broadcast %15 : vector<1x128xf32> to vector<4x128xf32>
    %17 = arith.mulf %13, %16 : vector<4x128xf32>
    %c128_i32 = arith.constant 128 : i32
    %18 = arith.muli %arg2, %c128_i32 : i32
    %19 = tpu.assume_multiple %18, 128 : i32
    %20 = arith.index_cast %arg1 : i32 to index
    %c0_13 = arith.constant 0 : index
    %21 = arith.index_cast %19 : i32 to index
    %22 = vector.load %arg10[%20, %c0_13, %21] : memref<2x4x512xf32, #tpu.memory_space<vmem>>, vector<1x4x128xf32>
    %23 = vector.shape_cast %22 : vector<1x4x128xf32> to vector<4x128xf32>
    %24 = vector.shape_cast %17 : vector<4x128xf32> to vector<1x4x128xf32>
    tpu.vector_store %arg10[%20, %c0_13, %21], %24 {strides = array<i32>} : memref<2x4x512xf32, #tpu.memory_space<vmem>>, vector<1x4x128xf32>,
    %c1_i32 = arith.constant 1 : i32
    %25 = arith.cmpi eq, %arg1, %c1_i32 : i32
    %c3_i32 = arith.constant 3 : i32
    %26 = arith.cmpi eq, %arg2, %c3_i32 : i32
    %27 = arith.andi %25, %26 : i1
    %28 = arith.extui %27 : i1 to i32
    %c0_i32 = arith.constant 0 : i32
    %29 = arith.cmpi ne, %28, %c0_i32 : i32
    scf.if %29 {
      %c0_14 = arith.constant 0 : index
      %c0_15 = arith.constant 0 : index
      %30 = vector.load %arg8[%c0_14, %c0_15] : memref<16x1xf32, #tpu.memory_space<vmem>>, vector<16x1xf32>
      %c0_16 = arith.constant 0 : index
      %c0_17 = arith.constant 0 : index
      %c0_18 = arith.constant 0 : index
      %c0_19 = arith.constant 0 : index
      %31 = vector.load %arg6[%c0_16, %c0_17, %c0_18, %c0_19] : memref<2x2x16x4xf32, #tpu.memory_space<vmem>>, vector<1x1x16x4xf32>
      %32 = vector.shape_cast %31 : vector<1x1x16x4xf32> to vector<16x4xf32>
      %c0_20 = arith.constant 0 : index
      %c0_21 = arith.constant 0 : index
      %c0_22 = arith.constant 0 : index
      %33 = vector.load %arg10[%c0_20, %c0_21, %c0_22] : memref<2x4x512xf32, #tpu.memory_space<vmem>>, vector<1x4x256xf32>
      %34 = vector.shape_cast %33 : vector<1x4x256xf32> to vector<4x256xf32>
      %cst_23 = arith.constant dense<0.000000e+00> : vector<16x256xf32>
      %35 = tpu.matmul %32, %34, %cst_23 {dimension_numbers = #tpu.dot_dimension_numbers<[1], [0], [0], [1], [0, 0, 1, 1], [], []>} : vector<16x4xf32>, vector<4x256xf32>, vector<16x256xf32> -> vector<16x256xf32>
      %36 = vector.broadcast %30 : vector<16x1xf32> to vector<16x256xf32>
      %37 = arith.addf %36, %35 : vector<16x256xf32>
      %c1 = arith.constant 1 : index
      %c0_24 = arith.constant 0 : index
      %c0_25 = arith.constant 0 : index
      %c0_26 = arith.constant 0 : index
      %38 = vector.load %arg6[%c1, %c0_24, %c0_25, %c0_26] : memref<2x2x16x4xf32, #tpu.memory_space<vmem>>, vector<1x1x16x4xf32>
      %39 = vector.shape_cast %38 : vector<1x1x16x4xf32> to vector<16x4xf32>
      %c1_27 = arith.constant 1 : index
      %c0_28 = arith.constant 0 : index
      %c0_29 = arith.constant 0 : index
      %40 = vector.load %arg10[%c1_27, %c0_28, %c0_29] : memref<2x4x512xf32, #tpu.memory_space<vmem>>, vector<1x4x256xf32>
      %41 = vector.shape_cast %40 : vector<1x4x256xf32> to vector<4x256xf32>
      %cst_30 = arith.constant dense<0.000000e+00> : vector<16x256xf32>
      %42 = tpu.matmul %39, %41, %cst_30 {dimension_numbers = #tpu.dot_dimension_numbers<[1], [0], [0], [1], [0, 0, 1, 1], [], []>} : vector<16x4xf32>, vector<4x256xf32>, vector<16x256xf32> -> vector<16x256xf32>
      %43 = arith.addf %37, %42 : vector<16x256xf32>
      %c0_31 = arith.constant 0 : index
      %c1_32 = arith.constant 1 : index
      %c0_33 = arith.constant 0 : index
      %c0_34 = arith.constant 0 : index
      %44 = vector.load %arg6[%c0_31, %c1_32, %c0_33, %c0_34] : memref<2x2x16x4xf32, #tpu.memory_space<vmem>>, vector<1x1x16x4xf32>
      %45 = vector.shape_cast %44 : vector<1x1x16x4xf32> to vector<16x4xf32>
      %c0_35 = arith.constant 0 : index
      %c0_36 = arith.constant 0 : index
      %c256 = arith.constant 256 : index
      %46 = vector.load %arg10[%c0_35, %c0_36, %c256] : memref<2x4x512xf32, #tpu.memory_space<vmem>>, vector<1x4x256xf32>
      %47 = vector.shape_cast %46 : vector<1x4x256xf32> to vector<4x256xf32>
      %cst_37 = arith.constant dense<0.000000e+00> : vector<16x256xf32>
      %48 = tpu.matmul %45, %47, %cst_37 {dimension_numbers = #tpu.dot_dimension_numbers<[1], [0], [0], [1], [0, 0, 1, 1], [], []>} : vector<16x4xf32>, vector<4x256xf32>, vector<16x256xf32> -> vector<16x256xf32>
      %49 = arith.addf %43, %48 : vector<16x256xf32>
      %c1_38 = arith.constant 1 : index
      %c1_39 = arith.constant 1 : index
      %c0_40 = arith.constant 0 : index
      %c0_41 = arith.constant 0 : index
      %50 = vector.load %arg6[%c1_38, %c1_39, %c0_40, %c0_41] : memref<2x2x16x4xf32, #tpu.memory_space<vmem>>, vector<1x1x16x4xf32>
      %51 = vector.shape_cast %50 : vector<1x1x16x4xf32> to vector<16x4xf32>
      %c1_42 = arith.constant 1 : index
      %c0_43 = arith.constant 0 : index
      %c256_44 = arith.constant 256 : index
      %52 = vector.load %arg10[%c1_42, %c0_43, %c256_44] : memref<2x4x512xf32, #tpu.memory_space<vmem>>, vector<1x4x256xf32>
      %53 = vector.shape_cast %52 : vector<1x4x256xf32> to vector<4x256xf32>
      %cst_45 = arith.constant dense<0.000000e+00> : vector<16x256xf32>
      %54 = tpu.matmul %51, %53, %cst_45 {dimension_numbers = #tpu.dot_dimension_numbers<[1], [0], [0], [1], [0, 0, 1, 1], [], []>} : vector<16x4xf32>, vector<4x256xf32>, vector<16x256xf32> -> vector<16x256xf32>
      %55 = arith.addf %49, %54 : vector<16x256xf32>
      %cst_46 = arith.constant dense<0.000000e+00> : vector<16xf32>
      %56 = vector.multi_reduction <add>, %55, %cst_46 [1] : vector<16x256xf32> to vector<16xf32>
      %57 = vector.shape_cast %56 : vector<16xf32> to vector<16x1xf32>
      %cst_47 = arith.constant 2.560000e+02 : f32
      %58 = vector.broadcast %cst_47 : f32 to vector<16x1xf32>
      %59 = arith.divf %57, %58 : vector<16x1xf32>
      %60 = arith.mulf %55, %55 : vector<16x256xf32>
      %cst_48 = arith.constant dense<0.000000e+00> : vector<16xf32>
      %61 = vector.multi_reduction <add>, %60, %cst_48 [1] : vector<16x256xf32> to vector<16xf32>
      %62 = vector.shape_cast %61 : vector<16xf32> to vector<16x1xf32>
      %cst_49 = arith.constant 2.560000e+02 : f32
      %63 = vector.broadcast %cst_49 : f32 to vector<16x1xf32>
      %64 = arith.divf %62, %63 : vector<16x1xf32>
      %65 = arith.mulf %59, %59 : vector<16x1xf32>
      %66 = arith.subf %64, %65 : vector<16x1xf32>
      %67 = vector.broadcast %59 : vector<16x1xf32> to vector<16x256xf32>
      %68 = arith.subf %55, %67 : vector<16x256xf32>
      %cst_50 = arith.constant 9.99999974E-6 : f32
      %69 = vector.broadcast %cst_50 : f32 to vector<16x1xf32>
      %70 = arith.addf %66, %69 : vector<16x1xf32>
      %71 = math.rsqrt %70 : vector<16x1xf32>
      %72 = vector.broadcast %71 : vector<16x1xf32> to vector<16x256xf32>
      %73 = arith.mulf %68, %72 : vector<16x256xf32>
      %c0_51 = arith.constant 0 : index
      %c0_52 = arith.constant 0 : index
      %74 = vector.load %arg7[%c0_51, %c0_52] : memref<16x16xf32, #tpu.memory_space<vmem>>, vector<16x16xf32>
      %cst_53 = arith.constant dense<0.000000e+00> : vector<16x256xf32>
      %75 = tpu.matmul %74, %73, %cst_53 {dimension_numbers = #tpu.dot_dimension_numbers<[1], [0], [0], [1], [0, 0, 1, 1], [], []>} : vector<16x16xf32>, vector<16x256xf32>, vector<16x256xf32> -> vector<16x256xf32>
      %76 = vector.broadcast %30 : vector<16x1xf32> to vector<16x256xf32>
      %77 = arith.addf %75, %76 : vector<16x256xf32>
      %c0_54 = arith.constant 0 : index
      %c0_55 = arith.constant 0 : index
      %c0_56 = arith.constant 0 : index
      %78 = vector.load %arg9[%c0_54, %c0_55, %c0_56] : memref<1x16x256xf32, #tpu.memory_space<vmem>>, vector<1x16x256xf32>
      %79 = vector.shape_cast %78 : vector<1x16x256xf32> to vector<16x256xf32>
      %80 = vector.shape_cast %77 : vector<16x256xf32> to vector<1x16x256xf32>
      tpu.vector_store %arg9[%c0_54, %c0_55, %c0_56], %80 {strides = array<i32>} : memref<1x16x256xf32, #tpu.memory_space<vmem>>, vector<1x16x256xf32>,
    } else {
    }
    return
  }
  func.func @transform_0(%arg0: i32, %arg1: i32, %arg2: i32) -> (i32, i32, i32, i32) {
    %c0_i32 = arith.constant 0 : i32
    %c0_i32_0 = arith.constant 0 : i32
    return %arg0, %arg1, %c0_i32, %arg2 : i32, i32, i32, i32
  }
  func.func @transform_1(%arg0: i32, %arg1: i32, %arg2: i32) -> (i32, i32, i32, i32) {
    %c0_i32 = arith.constant 0 : i32
    %c0_i32_0 = arith.constant 0 : i32
    %c0_i32_1 = arith.constant 0 : i32
    return %arg0, %arg1, %c0_i32, %c0_i32_0 : i32, i32, i32, i32
  }
  func.func @transform_2(%arg0: i32, %arg1: i32, %arg2: i32) -> (i32, i32, i32, i32) {
    %c0_i32 = arith.constant 0 : i32
    %c0_i32_0 = arith.constant 0 : i32
    %c0_i32_1 = arith.constant 0 : i32
    return %arg0, %arg1, %c0_i32, %c0_i32_0 : i32, i32, i32, i32
  }
  func.func @transform_3(%arg0: i32, %arg1: i32, %arg2: i32) -> (i32, i32, i32, i32) {
    %c0_i32 = arith.constant 0 : i32
    %c0_i32_0 = arith.constant 0 : i32
    %c0_i32_1 = arith.constant 0 : i32
    %c0_i32_2 = arith.constant 0 : i32
    %c0_i32_3 = arith.constant 0 : i32
    return %c0_i32, %c0_i32_0, %c0_i32_1, %c0_i32_2 : i32, i32, i32, i32
  }
  func.func @transform_4(%arg0: i32, %arg1: i32, %arg2: i32) -> (i32, i32) {
    %c0_i32 = arith.constant 0 : i32
    %c0_i32_0 = arith.constant 0 : i32
    %c0_i32_1 = arith.constant 0 : i32
    return %c0_i32, %c0_i32_0 : i32, i32
  }
  func.func @transform_5(%arg0: i32, %arg1: i32, %arg2: i32) -> (i32, i32) {
    %c0_i32 = arith.constant 0 : i32
    %c0_i32_0 = arith.constant 0 : i32
    %c0_i32_1 = arith.constant 0 : i32
    return %c0_i32, %c0_i32_0 : i32, i32
  }
  func.func @transform_6(%arg0: i32, %arg1: i32, %arg2: i32) -> (i32, i32, i32) {
    %c0_i32 = arith.constant 0 : i32
    %c0_i32_0 = arith.constant 0 : i32
    %c0_i32_1 = arith.constant 0 : i32
    return %arg0, %c0_i32, %c0_i32_0 : i32, i32, i32
  }
}

</mosaic_0001>

<llo_original>
// kernel: self_attention_forward.2
$region0: #{self_attention_forward.2}
  #allocation0 [shape = 'u32[]', space=smem, size = 0x4, offset = 0x4, fixed_abs, tag = 'smem constant byte address 0x4 - core index']
  #allocation1 [shape = 'u32[72,128]{1,0:T(1,128)}', space=vmem, size = 0x9000, scoped, tag = 'internal scratch']
  %s0 = inlined_call_operand.vmem [shape: f32[2,8,256], index: 0, kind: input, shape index: {}]
  %s1 = inlined_call_operand.vmem [shape: f32[48,8], index: 1, kind: input, shape index: {}]
  %s2 = inlined_call_operand.vmem [shape: f32[48,1], index: 2, kind: input, shape index: {}]
  %s3 = inlined_call_operand.vmem [shape: f32[2,48,256], index: 3, kind: output, shape index: {}]
  %s4 = sld [smem:[#allocation0]]
  $region45: #{self_attention_forward.2} parent=0
    _
  %s6 = ssub.s32 1, %s4
  %s7 = scalar_select 0, %s6, %s4
  loop: start=0, step=1, limit=4
  $region2: #{self_attention_forward.2} parent=0 // loop_pre_header
    _
  $region3: #{self_attention_forward.2} parent=0 // loop_header
    %s9 = sphi 0, %s13
    %p10 = scmp.ge.s32.totalorder %s9, 4
    %s19 = sphi 0, %s21
    %s22 = sphi 0, %s19
    %s23 = sphi 0, %s22
    %s39 = sphi 0, %s23
    %s43 = sphi 0, %s43
    %s45 = sphi 0, %s43
    %s46 = sphi 0, %s45
    %s60 = sphi 0, %s46
    %s64 = sphi 0, %s64
    %s66 = sphi 0, %s64
    %s67 = sphi 0, %s66
    %s81 = sphi 0, %s67
    %s87 = sphi 0, %s89
    %s90 = sphi 0, %s87
    %s91 = sphi 0, %s90
    %s107 = sphi 0, %s91
  $region4: #{self_attention_forward.2} parent=0 // loop_header_branch
    %12 = sbr.rel (%p10) target = $region8
  $region5: #{self_attention_forward.2} parent=0 // loop_body
    %s14 = ssub.s32 %s9, 1
    %s15 = ssub.s32 %s9, 2
    %s16 = sadd.s32 %s9, 1
    %s17 = ssub.s32 %s9, %s16
    %p18 = scmp.eq.s32.totalorder %s17, 0
    %s20 = sadd.s32 %s19, 1
    %s21 = scalar_select %p18, %s19, %s20
    %p24 = pneg %p18
    %p25 = scmp.eq.s32.totalorder %s9, 1
    %p26 = por %p24, %p25
    %p27 = scmp.ne.s32.totalorder %s19, %s22
    %p28 = scmp.eq.s32.totalorder %s9, 0
    %p29 = por %p27, %p28
    %p30 = scmp.ne.s32.totalorder %s19, %s22
    %p31 = scmp.eq.s32.totalorder %s14, 1
    %p32 = por %p30, %p31
    %p33 = scmp.ne.s32.totalorder %s22, %s23
    %p34 = scmp.eq.s32.totalorder %s14, 0
    %p35 = por %p33, %p34
    %p36 = scmp.ne.s32.totalorder %s22, %s23
    %p37 = scmp.eq.s32.totalorder %s15, 1
    %p38 = por %p36, %p37
    %p40 = scmp.ne.s32.totalorder %s23, %s39
    %p41 = scmp.eq.s32.totalorder %s15, 0
    %p42 = por %p40, %p41
    %s44 = sadd.s32 %s43, 1
    %p47 = scmp.eq.s32.totalorder %s9, 1
    %p48 = scmp.ne.s32.totalorder %s43, %s45
    %p49 = scmp.eq.s32.totalorder %s9, 0
    %p50 = por %p48, %p49
    %p51 = scmp.ne.s32.totalorder %s43, %s45
    %p52 = scmp.eq.s32.totalorder %s14, 1
    %p53 = por %p51, %p52
    %p54 = scmp.ne.s32.totalorder %s45, %s46
    %p55 = scmp.eq.s32.totalorder %s14, 0
    %p56 = por %p54, %p55
    %p57 = scmp.ne.s32.totalorder %s45, %s46
    %p58 = scmp.eq.s32.totalorder %s15, 1
    %p59 = por %p57, %p58
    %p61 = scmp.ne.s32.totalorder %s46, %s60
    %p62 = scmp.eq.s32.totalorder %s15, 0
    %p63 = por %p61, %p62
    %s65 = sadd.s32 %s64, 1
    %p68 = scmp.eq.s32.totalorder %s9, 1
    %p69 = scmp.ne.s32.totalorder %s64, %s66
    %p70 = scmp.eq.s32.totalorder %s9, 0
    %p71 = por %p69, %p70
    %p72 = scmp.ne.s32.totalorder %s64, %s66
    %p73 = scmp.eq.s32.totalorder %s14, 1
    %p74 = por %p72, %p73
    %p75 = scmp.ne.s32.totalorder %s66, %s67
    %p76 = scmp.eq.s32.totalorder %s14, 0
    %p77 = por %p75, %p76
    %p78 = scmp.ne.s32.totalorder %s66, %s67
    %p79 = scmp.eq.s32.totalorder %s15, 1
    %p80 = por %p78, %p79
    %p82 = scmp.ne.s32.totalorder %s67, %s81
    %p83 = scmp.eq.s32.totalorder %s15, 0
    %p84 = por %p82, %p83
    %s85 = ssub.s32 %s9, %s16
    %p86 = scmp.eq.s32.totalorder %s85, 0
    %s88 = sadd.s32 %s87, 1
    %s89 = scalar_select %p86, %s87, %s88
    %p92 = pneg %p86
    %p93 = scmp.eq.s32.totalorder %s9, 1
    %p94 = por %p92, %p93
    %p95 = scmp.ne.s32.totalorder %s87, %s90
    %p96 = scmp.eq.s32.totalorder %s9, 0
    %p97 = por %p95, %p96
    %p98 = scmp.ne.s32.totalorder %s87, %s90
    %p99 = scmp.eq.s32.totalorder %s14, 1
    %p100 = por %p98, %p99
    %p101 = scmp.ne.s32.totalorder %s90, %s91
    %p102 = scmp.eq.s32.totalorder %s14, 0
    %p103 = por %p101, %p102
    %p104 = scmp.ne.s32.totalorder %s90, %s91
    %p105 = scmp.eq.s32.totalorder %s15, 1
    %p106 = por %p104, %p105
    %p108 = scmp.ne.s32.totalorder %s91, %s107
    %p109 = scmp.eq.s32.totalorder %s15, 0
    %p110 = por %p108, %p109
    %p111 = scmp.le.s32.totalorder 1, %s9
    %p112 = scmp.lt.s32.totalorder %s9, 3
    %p113 = pnand %p111, %p112
    %p114 = pneg %p113
    // Predicated region
    $region9: #{self_attention_forward.2} parent=5 // pred_check
      _
    $region10: #{self_attention_forward.2} parent=5 // pred_check_branch
      %116 = sbr.rel (%p113) target = $region12
    $region11: #{self_attention_forward.2} parent=5 // pred_region
      %s117 = ssub.s32 %s9, 1
      // Predicated region
      $region13: #{self_attention_forward.2} parent=11 // pred_check
        %p118 = pneg %p56
      $region14: #{self_attention_forward.2} parent=11 // pred_check_branch
        %120 = sbr.rel (%p118) target = $region16
      $region15: #{self_attention_forward.2} parent=11 // pred_region
        _
      $region16: #{self_attention_forward.2} parent=11 // pred_fallthru
        _
      // Predicated region
      $region17: #{self_attention_forward.2} parent=11 // pred_check
        %p121 = pneg %p77
      $region18: #{self_attention_forward.2} parent=11 // pred_check_branch
        %123 = sbr.rel (%p121) target = $region20
      $region19: #{self_attention_forward.2} parent=11 // pred_region
        _
      $region20: #{self_attention_forward.2} parent=11 // pred_fallthru
        _
    $region12: #{self_attention_forward.2} parent=5 // pred_fallthru
      _
    %p124 = scmp.lt.s32.totalorder %s9, 2
    // Predicated region
    $region21: #{self_attention_forward.2} parent=5 // pred_check
      %p125 = pneg %p124
    $region22: #{self_attention_forward.2} parent=5 // pred_check_branch
      %127 = sbr.rel (%p125) target = $region24
    $region23: #{self_attention_forward.2} parent=5 // pred_region
      // Predicated region
      $region25: #{self_attention_forward.2} parent=23 // pred_check
        %p128 = pneg %p29
      $region26: #{self_attention_forward.2} parent=23 // pred_check_branch
        %130 = sbr.rel (%p128) target = $region28
      $region27: #{self_attention_forward.2} parent=23 // pred_region
        %p131 = scmp.lt.s32.totalorder %s9, 1
        %s132 = scalar_select %p131, %s9, 1
        %s133 = smul.addr %s132, 2
        %s134 = smul.addr %s133, 8
        %s135 = scalar_lea.vmem %s0, %s134
      $region28: #{self_attention_forward.2} parent=23 // pred_fallthru
        _
    $region24: #{self_attention_forward.2} parent=5 // pred_fallthru
      _
    %p136 = scmp.le.s32.totalorder 1, %s9
    %p137 = scmp.lt.s32.totalorder %s9, 3
    %p138 = pnand %p136, %p137
    %p139 = pneg %p138
    // Predicated region
    $region29: #{self_attention_forward.2} parent=5 // pred_check
      _
    $region30: #{self_attention_forward.2} parent=5 // pred_check_branch
      %141 = sbr.rel (%p138) target = $region32
    $region31: #{self_attention_forward.2} parent=5 // pred_region
      %s142 = ssub.s32 %s9, 1
      %p143 = scmp.lt.s32.totalorder %s14, 1
      %s144 = scalar_select %p143, %s14, 1
      %s145 = smul.addr %s144, 2
      %s146 = smul.addr %s145, 8
      %s147 = scalar_lea.vmem %s0, %s146
      %p148 = pneg %p35
      %p149 = pneg %p32
      %p150 = pneg %p56
      %p151 = pneg %p53
      %p152 = pneg %p77
      %p153 = pneg %p74
      %p154 = pneg %p103
      %p155 = pneg %p100
      %p156 = scmp.lt.s32.totalorder %s14, 1
      %s157 = scalar_select %p156, %s14, 1
      %s158 = smul.addr %s157, 12
      %s159 = smul.addr %s158, 8
      %s160 = scalar_lea.vmem %s3, %s159
      %p161 = scmp.lt.s32.totalorder %s14, 1
      %s162 = scalar_select %p161, %s14, 1
      %s163 = smul.addr %s162, 2
      %s164 = smul.addr %s163, 8
      %s165 = scalar_lea.vmem %s0, %s164
      %p166 = scmp.lt.s32.totalorder %s14, 1
      %s167 = scalar_select %p166, %s14, 1
      %s168 = smul.addr %s167, 12
      %s169 = smul.addr %s168, 8
      %s170 = scalar_lea.vmem %s3, %s169
      %v171 = vld [vmem:[%s165] sm:$0xff]
      %v172 = vld [vmem:[%s165 + $0x8] sm:$0xff]
      %v173 = vld [vmem:[%s1] sm:$0xff]
      %v174 = vld [vmem:[%s1 + $0x8] sm:$0xff]
      %v175 = vld [vmem:[%s1 + $0x10] sm:$0xff]
      %v176 = vld [vmem:[%s1 + $0x18] sm:$0xff]
      %v177 = vld [vmem:[%s1 + $0x20] sm:$0xff]
      %v178 = vld [vmem:[%s1 + $0x28] sm:$0xff]
      %v179 = vld [vmem:[%s2] sm:$0xff]
      %v180 = vld [vmem:[%s2 + $0x8] sm:$0xff]
      %v181 = vld [vmem:[%s2 + $0x10] sm:$0xff]
      %v182 = vld [vmem:[%s2 + $0x18] sm:$0xff]
      %v183 = vld [vmem:[%s2 + $0x20] sm:$0xff]
      %v184 = vld [vmem:[%s2 + $0x28] sm:$0xff]
      %186 = vset.pattern.permute.xlu0 0
      %187 = vperm.xlu0 %186, %v179
      %v188 = vpop.permute.xlu0 %187
      %191 = vset.pattern.permute.xlu0 0
      %192 = vperm.xlu0 %191, %v180
      %v193 = vpop.permute.xlu0 %192
      %196 = vset.pattern.permute.xlu0 0
      %197 = vperm.xlu0 %196, %v181
      %v198 = vpop.permute.xlu0 %197
      %201 = vset.pattern.permute.xlu0 0
      %202 = vperm.xlu0 %201, %v182
      %v203 = vpop.permute.xlu0 %202
      %206 = vset.pattern.permute.xlu0 0
      %207 = vperm.xlu0 %206, %v183
      %v208 = vpop.permute.xlu0 %207
      %211 = vset.pattern.permute.xlu0 0
      %212 = vperm.xlu0 %211, %v184
      %v213 = vpop.permute.xlu0 %212
      %vm215 = vcmask 64512
      %v217 = vsel %vm215, %v173, 0
      %v220 = vsel %vm215, %v174, 0
      %v223 = vsel %vm215, %v175, 0
      %v226 = vsel %vm215, %v176, 0
      %v229 = vsel %vm215, %v177, 0
      %v232 = vsel %vm215, %v178, 0
      %234 = vmatpush.msra.mxu0 0.0
      %235 = vmatpush.msra.mxu0 0.0
      %236 = vmatpush.msra.mxu0 0.0
      %237 = vmatpush.msra.mxu0 0.0
      %238 = vmatpush.msra.mxu0 0.0
      %239 = vmatpush.msra.mxu0 0.0
      %240 = vmatpush.msra.mxu0 0.0
      %241 = vmatpush.msra.mxu0 0.0
      %242 = vmatpush.msra.mxu0 0.0
      %243 = vmatpush.msra.mxu0 0.0
      %244 = vmatpush.msra.mxu0 0.0
      %245 = vmatpush.msra.mxu0 0.0
      %246 = vmatpush.msra.mxu0 0.0
      %247 = vmatpush.msra.mxu0 0.0
      %248 = vmatpush.msra.mxu0 0.0
      %249 = vmatpush.msra.mxu0 %v171
      %250 = vmatmul.f32.gmra.mxu0 %v217
      %v251 = vpop.f32.mrf.mxu0
      %v252 = vadd.f32 %v188, %v251
      %253 = vmatmul.f32.gmra.mxu0 %v220
      %v254 = vpop.f32.mrf.mxu0
      %v255 = vadd.f32 %v193, %v254
      %256 = vmatmul.f32.gmra.mxu0 %v223
      %v257 = vpop.f32.mrf.mxu0
      %v258 = vadd.f32 %v198, %v257
      %259 = vmatmul.f32.gmra.mxu0 %v226
      %v260 = vpop.f32.mrf.mxu0
      %v261 = vadd.f32 %v203, %v260
      %262 = vmatmul.f32.gmra.mxu0 %v229
      %v263 = vpop.f32.mrf.mxu0
      %v264 = vadd.f32 %v208, %v263
      %265 = vmatmul.f32.gmra.mxu0 %v232
      %v266 = vpop.f32.mrf.mxu0
      %v267 = vadd.f32 %v213, %v266
      %268 = vdwg.mxu0
      %269 = vmatpush.msra.mxu0 0.0
      %270 = vmatpush.msra.mxu0 0.0
      %271 = vmatpush.msra.mxu0 0.0
      %272 = vmatpush.msra.mxu0 0.0
      %273 = vmatpush.msra.mxu0 0.0
      %274 = vmatpush.msra.mxu0 0.0
      %275 = vmatpush.msra.mxu0 0.0
      %276 = vmatpush.msra.mxu0 0.0
      %277 = vmatpush.msra.mxu0 0.0
      %278 = vmatpush.msra.mxu0 0.0
      %279 = vmatpush.msra.mxu0 0.0
      %280 = vmatpush.msra.mxu0 0.0
      %281 = vmatpush.msra.mxu0 0.0
      %282 = vmatpush.msra.mxu0 0.0
      %283 = vmatpush.msra.mxu0 0.0
      %284 = vmatpush.msra.mxu0 %v172
      %285 = vmatmul.f32.gmra.mxu0 %v217
      %v286 = vpop.f32.mrf.mxu0
      %v287 = vadd.f32 %v188, %v286
      %288 = vmatmul.f32.gmra.mxu0 %v220
      %v289 = vpop.f32.mrf.mxu0
      %v290 = vadd.f32 %v193, %v289
      %291 = vmatmul.f32.gmra.mxu0 %v223
      %v292 = vpop.f32.mrf.mxu0
      %v293 = vadd.f32 %v198, %v292
      %294 = vmatmul.f32.gmra.mxu0 %v226
      %v295 = vpop.f32.mrf.mxu0
      %v296 = vadd.f32 %v203, %v295
      %297 = vmatmul.f32.gmra.mxu0 %v229
      %v298 = vpop.f32.mrf.mxu0
      %v299 = vadd.f32 %v208, %v298
      %300 = vmatmul.f32.gmra.mxu0 %v232
      %v301 = vpop.f32.mrf.mxu0
      %v302 = vadd.f32 %v213, %v301
      %303 = vdwg.mxu0
      %304 = vst [vmem:[%s170] sm:$0xff] %v252
      %305 = vst [vmem:[%s170 + $0x8] sm:$0xff] %v287
      %306 = vst [vmem:[%s170 + $0x10] sm:$0xff] %v255
      %307 = vst [vmem:[%s170 + $0x18] sm:$0xff] %v290
      %308 = vst [vmem:[%s170 + $0x20] sm:$0xff] %v258
      %309 = vst [vmem:[%s170 + $0x28] sm:$0xff] %v293
      %310 = vst [vmem:[%s170 + $0x30] sm:$0xff] %v261
      %311 = vst [vmem:[%s170 + $0x38] sm:$0xff] %v296
      %312 = vst [vmem:[%s170 + $0x40] sm:$0xff] %v264
      %313 = vst [vmem:[%s170 + $0x48] sm:$0xff] %v299
      %314 = vst [vmem:[%s170 + $0x50] sm:$0xff] %v267
      %315 = vst [vmem:[%s170 + $0x58] sm:$0xff] %v302
      %p316 = scmp.lt.s32.totalorder %s14, 1
      %s317 = scalar_select %p316, %s14, 1
      %s318 = smul.addr %s317, 12
      %s319 = smul.addr %s318, 8
      %s320 = scalar_lea.vmem %s3, %s319
      // Predicated region
      $region33: #{self_attention_forward.2} parent=31 // pred_check
        %p321 = pneg %p100
      $region34: #{self_attention_forward.2} parent=31 // pred_check_branch
        %323 = sbr.rel (%p321) target = $region36
      $region35: #{self_attention_forward.2} parent=31 // pred_region
        _
      $region36: #{self_attention_forward.2} parent=31 // pred_fallthru
        _
    $region32: #{self_attention_forward.2} parent=5 // pred_fallthru
      _
    %p324 = scmp.le.s32.totalorder 2, %s9
    // Predicated region
    $region37: #{self_attention_forward.2} parent=5 // pred_check
      %p325 = pneg %p324
    $region38: #{self_attention_forward.2} parent=5 // pred_check_branch
      %327 = sbr.rel (%p325) target = $region40
    $region39: #{self_attention_forward.2} parent=5 // pred_region
      %s328 = ssub.s32 %s9, 2
      // Predicated region
      $region41: #{self_attention_forward.2} parent=39 // pred_check
        %p329 = pneg %p106
      $region42: #{self_attention_forward.2} parent=39 // pred_check_branch
        %331 = sbr.rel (%p329) target = $region44
      $region43: #{self_attention_forward.2} parent=39 // pred_region
        %p332 = scmp.lt.s32.totalorder %s15, 1
        %s333 = scalar_select %p332, %s15, 1
        %s334 = smul.addr %s333, 12
        %s335 = smul.addr %s334, 8
        %s336 = scalar_lea.vmem %s3, %s335
      $region44: #{self_attention_forward.2} parent=39 // pred_fallthru
        _
    $region40: #{self_attention_forward.2} parent=5 // pred_fallthru
      _
  $region6: #{self_attention_forward.2} parent=0 // loop_footer
    %s13 = sadd.s32 1, %s9
  $region7: #{self_attention_forward.2} parent=0 // loop_footer_branch
    %8 = sbr.rel target = $region3
  $region8: #{self_attention_forward.2} parent=0 // loop_exit
    _

// kernel: self_attention_forward.3
$region0: #{self_attention_forward.3}
  #allocation0 [shape = 'u32[]', space=smem, size = 0x4, offset = 0x4, fixed_abs, tag = 'smem constant byte address 0x4 - core index']
  #allocation1 [shape = 'u32[72,128]{1,0:T(1,128)}', space=vmem, size = 0x9000, scoped, tag = 'internal scratch']
  #allocation2 [shape = 'f32[2,4,512]{2,1,0:T(4,128)}', space=vmem, size = 0x4000, scoped, tag = 'scratch operand']
  %s0 = inlined_call_operand.vmem [shape: f32[2,2,4,512], index: 0, kind: input, shape index: {}]
  %s1 = inlined_call_operand.vmem [shape: f32[2,2,4,512], index: 1, kind: input, shape index: {}]
  %s2 = inlined_call_operand.vmem [shape: f32[2,2,5,512], index: 2, kind: input, shape index: {}]
  %s3 = inlined_call_operand.vmem [shape: f32[2,2,16,4], index: 3, kind: input, shape index: {}]
  %s4 = inlined_call_operand.vmem [shape: f32[16,16], index: 4, kind: input, shape index: {}]
  %s5 = inlined_call_operand.vmem [shape: f32[16,1], index: 5, kind: input, shape index: {}]
  %s6 = inlined_call_operand.vmem [shape: f32[2,16,256], index: 6, kind: output, shape index: {}]
  %s7 = sld [smem:[#allocation0]]
  $region61: #{self_attention_forward.3} parent=0
    _
  %s9 = ssub.s32 1, %s7
  %s10 = scalar_select 0, %s9, %s7
  loop: start=0, step=1, limit=18
  $region2: #{self_attention_forward.3} parent=0 // loop_pre_header
    _
  $region3: #{self_attention_forward.3} parent=0 // loop_header
    %s12 = sphi 0, %s16
    %p13 = scmp.ge.s32.totalorder %s12, 18
    %s19 = sphi 0, %s38
    %s20 = sphi 0, %s34
    %s21 = sphi 0, %s30
    %s22 = sphi 0, %s19
    %s23 = sphi 0, %s20
    %s24 = sphi 0, %s21
    %s25 = sphi 0, %s22
    %s26 = sphi 0, %s23
    %s27 = sphi 0, %s24
    %s45 = sphi 0, %s47
    %s48 = sphi 0, %s45
    %s49 = sphi 0, %s48
    %s65 = sphi 0, %s49
    %s73 = sphi 0, %s75
    %s76 = sphi 0, %s73
    %s77 = sphi 0, %s76
    %s93 = sphi 0, %s77
    %s101 = sphi 0, %s103
    %s104 = sphi 0, %s101
    %s105 = sphi 0, %s104
    %s121 = sphi 0, %s105
    %s125 = sphi 0, %s125
    %s127 = sphi 0, %s125
    %s128 = sphi 0, %s127
    %s142 = sphi 0, %s128
    %s146 = sphi 0, %s146
    %s148 = sphi 0, %s146
    %s149 = sphi 0, %s148
    %s163 = sphi 0, %s149
    %s167 = sphi 0, %s167
    %s169 = sphi 0, %s167
    %s170 = sphi 0, %s169
    %s184 = sphi 0, %s170
    %s190 = sphi 0, %s192
    %s193 = sphi 0, %s190
    %s194 = sphi 0, %s193
    %s210 = sphi 0, %s194
  $region4: #{self_attention_forward.3} parent=0 // loop_header_branch
    %15 = sbr.rel (%p13) target = $region8
  $region5: #{self_attention_forward.3} parent=0 // loop_body
    %s17 = ssub.s32 %s12, 1
    %s18 = ssub.s32 %s12, 2
    %s28 = sadd.s32 1, %s21
    %p29 = scmp.ge.s32.totalorder %s28, 4
    %s30 = scalar_select %p29, 0, %s28
    %s31 = sadd.s32 1, %s20
    %s32 = scalar_select %p29, %s31, %s20
    %p33 = scmp.ge.s32.totalorder %s32, 2
    %s34 = scalar_select %p33, 0, %s32
    %s35 = sadd.s32 1, %s19
    %s36 = scalar_select %p33, %s35, %s19
    %p37 = scmp.ge.s32.totalorder %s36, 2
    %s38 = scalar_select %p37, 0, %s36
    %s39 = ssub.s32 %s19, %s38
    %s40 = ssub.s32 %s20, %s34
    %s41 = sor.u32 %s39, %s40
    %s42 = ssub.s32 %s21, %s30
    %s43 = sor.u32 %s41, %s42
    %p44 = scmp.eq.s32.totalorder %s43, 0
    %s46 = sadd.s32 %s45, 1
    %s47 = scalar_select %p44, %s45, %s46
    %p50 = pneg %p44
    %p51 = scmp.eq.s32.totalorder %s12, 15
    %p52 = por %p50, %p51
    %p53 = scmp.ne.s32.totalorder %s45, %s48
    %p54 = scmp.eq.s32.totalorder %s12, 0
    %p55 = por %p53, %p54
    %p56 = scmp.ne.s32.totalorder %s45, %s48
    %p57 = scmp.eq.s32.totalorder %s17, 15
    %p58 = por %p56, %p57
    %p59 = scmp.ne.s32.totalorder %s48, %s49
    %p60 = scmp.eq.s32.totalorder %s17, 0
    %p61 = por %p59, %p60
    %p62 = scmp.ne.s32.totalorder %s48, %s49
    %p63 = scmp.eq.s32.totalorder %s18, 15
    %p64 = por %p62, %p63
    %p66 = scmp.ne.s32.totalorder %s49, %s65
    %p67 = scmp.eq.s32.totalorder %s18, 0
    %p68 = por %p66, %p67
    %s69 = ssub.s32 %s19, %s38
    %s70 = ssub.s32 %s20, %s34
    %s71 = sor.u32 %s69, %s70
    %p72 = scmp.eq.s32.totalorder %s71, 0
    %s74 = sadd.s32 %s73, 1
    %s75 = scalar_select %p72, %s73, %s74
    %p78 = pneg %p72
    %p79 = scmp.eq.s32.totalorder %s12, 15
    %p80 = por %p78, %p79
    %p81 = scmp.ne.s32.totalorder %s73, %s76
    %p82 = scmp.eq.s32.totalorder %s12, 0
    %p83 = por %p81, %p82
    %p84 = scmp.ne.s32.totalorder %s73, %s76
    %p85 = scmp.eq.s32.totalorder %s17, 15
    %p86 = por %p84, %p85
    %p87 = scmp.ne.s32.totalorder %s76, %s77
    %p88 = scmp.eq.s32.totalorder %s17, 0
    %p89 = por %p87, %p88
    %p90 = scmp.ne.s32.totalorder %s76, %s77
    %p91 = scmp.eq.s32.totalorder %s18, 15
    %p92 = por %p90, %p91
    %p94 = scmp.ne.s32.totalorder %s77, %s93
    %p95 = scmp.eq.s32.totalorder %s18, 0
    %p96 = por %p94, %p95
    %s97 = ssub.s32 %s19, %s38
    %s98 = ssub.s32 %s20, %s34
    %s99 = sor.u32 %s97, %s98
    %p100 = scmp.eq.s32.totalorder %s99, 0
    %s102 = sadd.s32 %s101, 1
    %s103 = scalar_select %p100, %s101, %s102
    %p106 = pneg %p100
    %p107 = scmp.eq.s32.totalorder %s12, 15
    %p108 = por %p106, %p107
    %p109 = scmp.ne.s32.totalorder %s101, %s104
    %p110 = scmp.eq.s32.totalorder %s12, 0
    %p111 = por %p109, %p110
    %p112 = scmp.ne.s32.totalorder %s101, %s104
    %p113 = scmp.eq.s32.totalorder %s17, 15
    %p114 = por %p112, %p113
    %p115 = scmp.ne.s32.totalorder %s104, %s105
    %p116 = scmp.eq.s32.totalorder %s17, 0
    %p117 = por %p115, %p116
    %p118 = scmp.ne.s32.totalorder %s104, %s105
    %p119 = scmp.eq.s32.totalorder %s18, 15
    %p120 = por %p118, %p119
    %p122 = scmp.ne.s32.totalorder %s105, %s121
    %p123 = scmp.eq.s32.totalorder %s18, 0
    %p124 = por %p122, %p123
    %s126 = sadd.s32 %s125, 1
    %p129 = scmp.eq.s32.totalorder %s12, 15
    %p130 = scmp.ne.s32.totalorder %s125, %s127
    %p131 = scmp.eq.s32.totalorder %s12, 0
    %p132 = por %p130, %p131
    %p133 = scmp.ne.s32.totalorder %s125, %s127
    %p134 = scmp.eq.s32.totalorder %s17, 15
    %p135 = por %p133, %p134
    %p136 = scmp.ne.s32.totalorder %s127, %s128
    %p137 = scmp.eq.s32.totalorder %s17, 0
    %p138 = por %p136, %p137
    %p139 = scmp.ne.s32.totalorder %s127, %s128
    %p140 = scmp.eq.s32.totalorder %s18, 15
    %p141 = por %p139, %p140
    %p143 = scmp.ne.s32.totalorder %s128, %s142
    %p144 = scmp.eq.s32.totalorder %s18, 0
    %p145 = por %p143, %p144
    %s147 = sadd.s32 %s146, 1
    %p150 = scmp.eq.s32.totalorder %s12, 15
    %p151 = scmp.ne.s32.totalorder %s146, %s148
    %p152 = scmp.eq.s32.totalorder %s12, 0
    %p153 = por %p151, %p152
    %p154 = scmp.ne.s32.totalorder %s146, %s148
    %p155 = scmp.eq.s32.totalorder %s17, 15
    %p156 = por %p154, %p155
    %p157 = scmp.ne.s32.totalorder %s148, %s149
    %p158 = scmp.eq.s32.totalorder %s17, 0
    %p159 = por %p157, %p158
    %p160 = scmp.ne.s32.totalorder %s148, %s149
    %p161 = scmp.eq.s32.totalorder %s18, 15
    %p162 = por %p160, %p161
    %p164 = scmp.ne.s32.totalorder %s149, %s163
    %p165 = scmp.eq.s32.totalorder %s18, 0
    %p166 = por %p164, %p165
    %s168 = sadd.s32 %s167, 1
    %p171 = scmp.eq.s32.totalorder %s12, 15
    %p172 = scmp.ne.s32.totalorder %s167, %s169
    %p173 = scmp.eq.s32.totalorder %s12, 0
    %p174 = por %p172, %p173
    %p175 = scmp.ne.s32.totalorder %s167, %s169
    %p176 = scmp.eq.s32.totalorder %s17, 15
    %p177 = por %p175, %p176
    %p178 = scmp.ne.s32.totalorder %s169, %s170
    %p179 = scmp.eq.s32.totalorder %s17, 0
    %p180 = por %p178, %p179
    %p181 = scmp.ne.s32.totalorder %s169, %s170
    %p182 = scmp.eq.s32.totalorder %s18, 15
    %p183 = por %p181, %p182
    %p185 = scmp.ne.s32.totalorder %s170, %s184
    %p186 = scmp.eq.s32.totalorder %s18, 0
    %p187 = por %p185, %p186
    %s188 = ssub.s32 %s19, %s38
    %p189 = scmp.eq.s32.totalorder %s188, 0
    %s191 = sadd.s32 %s190, 1
    %s192 = scalar_select %p189, %s190, %s191
    %p195 = pneg %p189
    %p196 = scmp.eq.s32.totalorder %s12, 15
    %p197 = por %p195, %p196
    %p198 = scmp.ne.s32.totalorder %s190, %s193
    %p199 = scmp.eq.s32.totalorder %s12, 0
    %p200 = por %p198, %p199
    %p201 = scmp.ne.s32.totalorder %s190, %s193
    %p202 = scmp.eq.s32.totalorder %s17, 15
    %p203 = por %p201, %p202
    %p204 = scmp.ne.s32.totalorder %s193, %s194
    %p205 = scmp.eq.s32.totalorder %s17, 0
    %p206 = por %p204, %p205
    %p207 = scmp.ne.s32.totalorder %s193, %s194
    %p208 = scmp.eq.s32.totalorder %s18, 15
    %p209 = por %p207, %p208
    %p211 = scmp.ne.s32.totalorder %s194, %s210
    %p212 = scmp.eq.s32.totalorder %s18, 0
    %p213 = por %p211, %p212
    %p214 = scmp.le.s32.totalorder 1, %s12
    %p215 = scmp.lt.s32.totalorder %s12, 17
    %p216 = pnand %p214, %p215
    %p217 = pneg %p216
    // Predicated region
    $region9: #{self_attention_forward.3} parent=5 // pred_check
      _
    $region10: #{self_attention_forward.3} parent=5 // pred_check_branch
      %219 = sbr.rel (%p216) target = $region12
    $region11: #{self_attention_forward.3} parent=5 // pred_region
      %s220 = ssub.s32 %s12, 1
      // Predicated region
      $region13: #{self_attention_forward.3} parent=11 // pred_check
        %p221 = pneg %p138
      $region14: #{self_attention_forward.3} parent=11 // pred_check_branch
        %223 = sbr.rel (%p221) target = $region16
      $region15: #{self_attention_forward.3} parent=11 // pred_region
        _
      $region16: #{self_attention_forward.3} parent=11 // pred_fallthru
        _
      // Predicated region
      $region17: #{self_attention_forward.3} parent=11 // pred_check
        %p224 = pneg %p159
      $region18: #{self_attention_forward.3} parent=11 // pred_check_branch
        %226 = sbr.rel (%p224) target = $region20
      $region19: #{self_attention_forward.3} parent=11 // pred_region
        _
      $region20: #{self_attention_forward.3} parent=11 // pred_fallthru
        _
      // Predicated region
      $region21: #{self_attention_forward.3} parent=11 // pred_check
        %p227 = pneg %p180
      $region22: #{self_attention_forward.3} parent=11 // pred_check_branch
        %229 = sbr.rel (%p227) target = $region24
      $region23: #{self_attention_forward.3} parent=11 // pred_region
        _
      $region24: #{self_attention_forward.3} parent=11 // pred_fallthru
        _
    $region12: #{self_attention_forward.3} parent=5 // pred_fallthru
      _
    %p230 = scmp.lt.s32.totalorder %s12, 16
    // Predicated region
    $region25: #{self_attention_forward.3} parent=5 // pred_check
      %p231 = pneg %p230
    $region26: #{self_attention_forward.3} parent=5 // pred_check_branch
      %233 = sbr.rel (%p231) target = $region28
    $region27: #{self_attention_forward.3} parent=5 // pred_region
      // Predicated region
      $region29: #{self_attention_forward.3} parent=27 // pred_check
        %p234 = pneg %p55
      $region30: #{self_attention_forward.3} parent=27 // pred_check_branch
        %236 = sbr.rel (%p234) target = $region32
      $region31: #{self_attention_forward.3} parent=27 // pred_region
        %p237 = scmp.lt.s32.totalorder %s19, 1
        %s238 = scalar_select %p237, %s19, 1
        %p239 = scmp.lt.s32.totalorder %s20, 1
        %s240 = scalar_select %p239, %s20, 1
        %p241 = scmp.lt.s32.totalorder %s21, 3
        %s242 = scalar_select %p241, %s21, 3
        %s243 = smul.addr %s240, 4
        %s244 = sadd.s32 %s242, %s243
        %s245 = smul.addr %s238, 8
        %s246 = sadd.s32 %s244, %s245
        %s247 = smul.addr %s246, 4
        %s248 = scalar_lea.vmem %s0, %s247
      $region32: #{self_attention_forward.3} parent=27 // pred_fallthru
        _
      // Predicated region
      $region33: #{self_attention_forward.3} parent=27 // pred_check
        %p249 = pneg %p83
      $region34: #{self_attention_forward.3} parent=27 // pred_check_branch
        %251 = sbr.rel (%p249) target = $region36
      $region35: #{self_attention_forward.3} parent=27 // pred_region
        %p252 = scmp.lt.s32.totalorder %s19, 1
        %s253 = scalar_select %p252, %s19, 1
        %p254 = scmp.lt.s32.totalorder %s20, 1
        %s255 = scalar_select %p254, %s20, 1
        %s256 = smul.addr %s255, 4
        %s257 = smul.addr %s253, 8
        %s258 = sadd.s32 %s256, %s257
        %s259 = smul.addr %s258, 4
        %s260 = scalar_lea.vmem %s1, %s259
      $region36: #{self_attention_forward.3} parent=27 // pred_fallthru
        _
      // Predicated region
      $region37: #{self_attention_forward.3} parent=27 // pred_check
        %p261 = pneg %p111
      $region38: #{self_attention_forward.3} parent=27 // pred_check_branch
        %263 = sbr.rel (%p261) target = $region40
      $region39: #{self_attention_forward.3} parent=27 // pred_region
        %p264 = scmp.lt.s32.totalorder %s19, 1
        %s265 = scalar_select %p264, %s19, 1
        %p266 = scmp.lt.s32.totalorder %s20, 1
        %s267 = scalar_select %p266, %s20, 1
        %s268 = smul.addr %s267, 4
        %s269 = smul.addr %s265, 8
        %s270 = sadd.s32 %s268, %s269
        %s271 = smul.addr %s270, 8
        %s272 = scalar_lea.vmem %s2, %s271
      $region40: #{self_attention_forward.3} parent=27 // pred_fallthru
        _
    $region28: #{self_attention_forward.3} parent=5 // pred_fallthru
      _
    %p273 = scmp.le.s32.totalorder 1, %s12
    %p274 = scmp.lt.s32.totalorder %s12, 17
    %p275 = pnand %p273, %p274
    %p276 = pneg %p275
    // Predicated region
    $region41: #{self_attention_forward.3} parent=5 // pred_check
      _
    $region42: #{self_attention_forward.3} parent=5 // pred_check_branch
      %278 = sbr.rel (%p275) target = $region44
    $region43: #{self_attention_forward.3} parent=5 // pred_region
      %s279 = ssub.s32 %s12, 1
      %p280 = scmp.lt.s32.totalorder %s22, 1
      %s281 = scalar_select %p280, %s22, 1
      %p282 = scmp.lt.s32.totalorder %s23, 1
      %s283 = scalar_select %p282, %s23, 1
      %p284 = scmp.lt.s32.totalorder %s24, 3
      %s285 = scalar_select %p284, %s24, 3
      %s286 = smul.addr %s283, 4
      %s287 = sadd.s32 %s285, %s286
      %s288 = smul.addr %s281, 8
      %s289 = sadd.s32 %s287, %s288
      %s290 = smul.addr %s289, 4
      %s291 = scalar_lea.vmem %s0, %s290
      %p292 = pneg %p61
      %p293 = pneg %p58
      %p294 = scmp.lt.s32.totalorder %s22, 1
      %s295 = scalar_select %p294, %s22, 1
      %p296 = scmp.lt.s32.totalorder %s23, 1
      %s297 = scalar_select %p296, %s23, 1
      %s298 = smul.addr %s297, 4
      %s299 = smul.addr %s295, 8
      %s300 = sadd.s32 %s298, %s299
      %s301 = smul.addr %s300, 4
      %s302 = scalar_lea.vmem %s1, %s301
      %p303 = pneg %p89
      %p304 = pneg %p86
      %p305 = scmp.lt.s32.totalorder %s22, 1
      %s306 = scalar_select %p305, %s22, 1
      %p307 = scmp.lt.s32.totalorder %s23, 1
      %s308 = scalar_select %p307, %s23, 1
      %s309 = smul.addr %s308, 4
      %s310 = smul.addr %s306, 8
      %s311 = sadd.s32 %s309, %s310
      %s312 = smul.addr %s311, 8
      %s313 = scalar_lea.vmem %s2, %s312
      %p314 = pneg %p117
      %p315 = pneg %p114
      %p316 = pneg %p138
      %p317 = pneg %p135
      %p318 = pneg %p159
      %p319 = pneg %p156
      %p320 = pneg %p180
      %p321 = pneg %p177
      %p322 = pneg %p206
      %p323 = pneg %p203
      %p324 = scmp.lt.s32.totalorder %s22, 1
      %s325 = scalar_select %p324, %s22, 1
      %s326 = smul.addr %s325, 4
      %s327 = smul.addr %s326, 8
      %s328 = scalar_lea.vmem %s6, %s327
      %p329 = scmp.lt.s32.totalorder %s22, 1
      %s330 = scalar_select %p329, %s22, 1
      %p331 = scmp.lt.s32.totalorder %s23, 1
      %s332 = scalar_select %p331, %s23, 1
      %p333 = scmp.lt.s32.totalorder %s24, 3
      %s334 = scalar_select %p333, %s24, 3
      %s335 = smul.addr %s332, 4
      %s336 = sadd.s32 %s334, %s335
      %s337 = smul.addr %s330, 8
      %s338 = sadd.s32 %s336, %s337
      %s339 = smul.addr %s338, 4
      %s340 = scalar_lea.vmem %s0, %s339
      %p341 = scmp.lt.s32.totalorder %s22, 1
      %s342 = scalar_select %p341, %s22, 1
      %p343 = scmp.lt.s32.totalorder %s23, 1
      %s344 = scalar_select %p343, %s23, 1
      %s345 = smul.addr %s344, 4
      %s346 = smul.addr %s342, 8
      %s347 = sadd.s32 %s345, %s346
      %s348 = smul.addr %s347, 4
      %s349 = scalar_lea.vmem %s1, %s348
      %p350 = scmp.lt.s32.totalorder %s22, 1
      %s351 = scalar_select %p350, %s22, 1
      %p352 = scmp.lt.s32.totalorder %s23, 1
      %s353 = scalar_select %p352, %s23, 1
      %s354 = smul.addr %s353, 4
      %s355 = smul.addr %s351, 8
      %s356 = sadd.s32 %s354, %s355
      %s357 = smul.addr %s356, 8
      %s358 = scalar_lea.vmem %s2, %s357
      %p359 = scmp.lt.s32.totalorder %s22, 1
      %s360 = scalar_select %p359, %s22, 1
      %s361 = smul.addr %s360, 4
      %s362 = smul.addr %s361, 8
      %s363 = scalar_lea.vmem %s6, %s362
      %v364 = vld [vmem:[%s340] sm:$0xf]
      %v365 = vld [vmem:[%s349] sm:$0xff]
      %v366 = vld [vmem:[%s349 + $0x8] sm:$0xff]
      %v367 = vld [vmem:[%s358] sm:$0x1f]
      %v368 = vld [vmem:[%s358 + $0x8] sm:$0x1f]
      %v369 = vld [vmem:[%s358 + $0x10] sm:$0x1f]
      %v370 = vld [vmem:[%s358 + $0x18] sm:$0x1f]
      %371 = vxpose.xlu0.b32.start [1/16] %v364, 128
      %372 = vxpose.xlu0.b32.cont [2/16] 0.0, 128
      %373 = vxpose.xlu0.b32.cont [3/16] 0.0, 128
      %374 = vxpose.xlu0.b32.cont [4/16] 0.0, 128
      %375 = vxpose.xlu0.b32.cont [5/16] 0.0, 128
      %376 = vxpose.xlu0.b32.cont [6/16] 0.0, 128
      %377 = vxpose.xlu0.b32.cont [7/16] 0.0, 128
      %378 = vxpose.xlu0.b32.cont [8/16] 0.0, 128
      %379 = vxpose.xlu0.b32.cont [9/16] 0.0, 128
      %380 = vxpose.xlu0.b32.cont [10/16] 0.0, 128
      %381 = vxpose.xlu0.b32.cont [11/16] 0.0, 128
      %382 = vxpose.xlu0.b32.cont [12/16] 0.0, 128
      %383 = vxpose.xlu0.b32.cont [13/16] 0.0, 128
      %384 = vxpose.xlu0.b32.cont [14/16] 0.0, 128
      %385 = vxpose.xlu0.b32.cont [15/16] 0.0, 128
      %386 = vxpose.xlu0.b32.end [16/16] 0.0, 128
      %v387 = vpop.trf.xlu0
      %v388 = vpop.trf.xlu0
      %v389 = vpop.trf.xlu0
      %v390 = vpop.trf.xlu0
      %v391 = vpop.trf.xlu0
      %v392 = vpop.trf.xlu0
      %v393 = vpop.trf.xlu0
      %v394 = vpop.trf.xlu0
      %v395 = vpop.trf.xlu0
      %v396 = vpop.trf.xlu0
      %v397 = vpop.trf.xlu0
      %v398 = vpop.trf.xlu0
      %v399 = vpop.trf.xlu0
      %v400 = vpop.trf.xlu0
      %v401 = vpop.trf.xlu0
      %v402 = vpop.trf.xlu0
      %405 = vst [vmem:[#allocation1] ss:$2 sm:$0xff] %v365
      %s406 = scalar_lea.vmem [#allocation1], 16
      %407 = vst [vmem:[%s406] ss:$2 sm:$0xff] %v366
      %v408 = vld.sshfl [vmem:[#allocation1] sm:$0xff pattern:$0x75316420]
      %v409 = vld.sshfl [vmem:[#allocation1 + $0x8] sm:$0xff pattern:$0x75316420]
      %v410 = vld.sshfl [vmem:[#allocation1 + $0x10] sm:$0xff pattern:$0x75316420]
      %v411 = vld.sshfl [vmem:[#allocation1 + $0x18] sm:$0xff pattern:$0x75316420]
      %vm412 = vcmask 31744
      %v414 = vsel %vm412, %v387, 0
      %v417 = vsel %vm412, %v388, 0
      %v420 = vsel %vm412, %v389, 0
      %v423 = vsel %vm412, %v390, 0
      %v426 = vsel %vm412, %v391, 0
      %v429 = vsel %vm412, %v392, 0
      %v432 = vsel %vm412, %v393, 0
      %v435 = vsel %vm412, %v394, 0
      %v438 = vsel %vm412, %v395, 0
      %v441 = vsel %vm412, %v396, 0
      %v444 = vsel %vm412, %v397, 0
      %v447 = vsel %vm412, %v398, 0
      %v450 = vsel %vm412, %v399, 0
      %v453 = vsel %vm412, %v400, 0
      %v456 = vsel %vm412, %v401, 0
      %v459 = vsel %vm412, %v402, 0
      %vm461 = vcmask 1043456
      %v462 = vsel %vm461, %v408, 0
      %v464 = vsel %vm461, %v409, 0
      %v466 = vsel %vm461, %v410, 0
      %v468 = vsel %vm461, %v411, 0
      %470 = vmatpush.msra.mxu0 0.0
      %471 = vmatpush.msra.mxu0 0.0
      %472 = vmatpush.msra.mxu0 0.0
      %473 = vmatpush.msra.mxu0 0.0
      %474 = vmatpush.msra.mxu0 0.0
      %475 = vmatpush.msra.mxu0 0.0
      %476 = vmatpush.msra.mxu0 0.0
      %477 = vmatpush.msra.mxu0 0.0
      %478 = vmatpush.msra.mxu0 0.0
      %479 = vmatpush.msra.mxu0 0.0
      %480 = vmatpush.msra.mxu0 0.0
      %481 = vmatpush.msra.mxu0 0.0
      %482 = vmatpush.msra.mxu0 0.0
      %483 = vmatpush.msra.mxu0 0.0
      %484 = vmatpush.msra.mxu0 0.0
      %485 = vmatpush.msra.mxu0 %v462
      %486 = vmatmul.f32.gmra.mxu0 %v414
      %v487 = vpop.f32.mrf.mxu0
      %v488 = vadd.f32 0.0, %v487
      %489 = vmatmul.f32.gmra.mxu0 %v417
      %v490 = vpop.f32.mrf.mxu0
      %v491 = vadd.f32 0.0, %v490
      %492 = vmatmul.f32.gmra.mxu0 %v420
      %v493 = vpop.f32.mrf.mxu0
      %v494 = vadd.f32 0.0, %v493
      %495 = vmatmul.f32.gmra.mxu0 %v423
      %v496 = vpop.f32.mrf.mxu0
      %v497 = vadd.f32 0.0, %v496
      %498 = vmatmul.f32.gmra.mxu0 %v426
      %v499 = vpop.f32.mrf.mxu0
      %v500 = vadd.f32 0.0, %v499
      %501 = vmatmul.f32.gmra.mxu0 %v429
      %v502 = vpop.f32.mrf.mxu0
      %v503 = vadd.f32 0.0, %v502
      %504 = vmatmul.f32.gmra.mxu0 %v432
      %v505 = vpop.f32.mrf.mxu0
      %v506 = vadd.f32 0.0, %v505
      %507 = vmatmul.f32.gmra.mxu0 %v435
      %v508 = vpop.f32.mrf.mxu0
      %v509 = vadd.f32 0.0, %v508
      %510 = vmatmul.f32.gmra.mxu0 %v438
      %v511 = vpop.f32.mrf.mxu0
      %v512 = vadd.f32 0.0, %v511
      %513 = vmatmul.f32.gmra.mxu0 %v441
      %v514 = vpop.f32.mrf.mxu0
      %v515 = vadd.f32 0.0, %v514
      %516 = vmatmul.f32.gmra.mxu0 %v444
      %v517 = vpop.f32.mrf.mxu0
      %v518 = vadd.f32 0.0, %v517
      %519 = vmatmul.f32.gmra.mxu0 %v447
      %v520 = vpop.f32.mrf.mxu0
      %v521 = vadd.f32 0.0, %v520
      %522 = vmatmul.f32.gmra.mxu0 %v450
      %v523 = vpop.f32.mrf.mxu0
      %v524 = vadd.f32 0.0, %v523
      %525 = vmatmul.f32.gmra.mxu0 %v453
      %v526 = vpop.f32.mrf.mxu0
      %v527 = vadd.f32 0.0, %v526
      %528 = vmatmul.f32.gmra.mxu0 %v456
      %v529 = vpop.f32.mrf.mxu0
      %v530 = vadd.f32 0.0, %v529
      %531 = vmatmul.f32.gmra.mxu0 %v459
      %v532 = vpop.f32.mrf.mxu0
      %v533 = vadd.f32 0.0, %v532
      %534 = vdwg.mxu0
      %535 = vmatpush.msra.mxu0 0.0
      %536 = vmatpush.msra.mxu0 0.0
      %537 = vmatpush.msra.mxu0 0.0
      %538 = vmatpush.msra.mxu0 0.0
      %539 = vmatpush.msra.mxu0 0.0
      %540 = vmatpush.msra.mxu0 0.0
      %541 = vmatpush.msra.mxu0 0.0
      %542 = vmatpush.msra.mxu0 0.0
      %543 = vmatpush.msra.mxu0 0.0
      %544 = vmatpush.msra.mxu0 0.0
      %545 = vmatpush.msra.mxu0 0.0
      %546 = vmatpush.msra.mxu0 0.0
      %547 = vmatpush.msra.mxu0 0.0
      %548 = vmatpush.msra.mxu0 0.0
      %549 = vmatpush.msra.mxu0 0.0
      %550 = vmatpush.msra.mxu0 %v464
      %551 = vmatmul.f32.gmra.mxu0 %v414
      %v552 = vpop.f32.mrf.mxu0
      %v553 = vadd.f32 0.0, %v552
      %554 = vmatmul.f32.gmra.mxu0 %v417
      %v555 = vpop.f32.mrf.mxu0
      %v556 = vadd.f32 0.0, %v555
      %557 = vmatmul.f32.gmra.mxu0 %v420
      %v558 = vpop.f32.mrf.mxu0
      %v559 = vadd.f32 0.0, %v558
      %560 = vmatmul.f32.gmra.mxu0 %v423
      %v561 = vpop.f32.mrf.mxu0
      %v562 = vadd.f32 0.0, %v561
      %563 = vmatmul.f32.gmra.mxu0 %v426
      %v564 = vpop.f32.mrf.mxu0
      %v565 = vadd.f32 0.0, %v564
      %566 = vmatmul.f32.gmra.mxu0 %v429
      %v567 = vpop.f32.mrf.mxu0
      %v568 = vadd.f32 0.0, %v567
      %569 = vmatmul.f32.gmra.mxu0 %v432
      %v570 = vpop.f32.mrf.mxu0
      %v571 = vadd.f32 0.0, %v570
      %572 = vmatmul.f32.gmra.mxu0 %v435
      %v573 = vpop.f32.mrf.mxu0
      %v574 = vadd.f32 0.0, %v573
      %575 = vmatmul.f32.gmra.mxu0 %v438
      %v576 = vpop.f32.mrf.mxu0
      %v577 = vadd.f32 0.0, %v576
      %578 = vmatmul.f32.gmra.mxu0 %v441
      %v579 = vpop.f32.mrf.mxu0
      %v580 = vadd.f32 0.0, %v579
      %581 = vmatmul.f32.gmra.mxu0 %v444
      %v582 = vpop.f32.mrf.mxu0
      %v583 = vadd.f32 0.0, %v582
      %584 = vmatmul.f32.gmra.mxu0 %v447
      %v585 = vpop.f32.mrf.mxu0
      %v586 = vadd.f32 0.0, %v585
      %587 = vmatmul.f32.gmra.mxu0 %v450
      %v588 = vpop.f32.mrf.mxu0
      %v589 = vadd.f32 0.0, %v588
      %590 = vmatmul.f32.gmra.mxu0 %v453
      %v591 = vpop.f32.mrf.mxu0
      %v592 = vadd.f32 0.0, %v591
      %593 = vmatmul.f32.gmra.mxu0 %v456
      %v594 = vpop.f32.mrf.mxu0
      %v595 = vadd.f32 0.0, %v594
      %596 = vmatmul.f32.gmra.mxu0 %v459
      %v597 = vpop.f32.mrf.mxu0
      %v598 = vadd.f32 0.0, %v597
      %599 = vdwg.mxu0
      %600 = vmatpush.msra.mxu0 0.0
      %601 = vmatpush.msra.mxu0 0.0
      %602 = vmatpush.msra.mxu0 0.0
      %603 = vmatpush.msra.mxu0 0.0
      %604 = vmatpush.msra.mxu0 0.0
      %605 = vmatpush.msra.mxu0 0.0
      %606 = vmatpush.msra.mxu0 0.0
      %607 = vmatpush.msra.mxu0 0.0
      %608 = vmatpush.msra.mxu0 0.0
      %609 = vmatpush.msra.mxu0 0.0
      %610 = vmatpush.msra.mxu0 0.0
      %611 = vmatpush.msra.mxu0 0.0
      %612 = vmatpush.msra.mxu0 0.0
      %613 = vmatpush.msra.mxu0 0.0
      %614 = vmatpush.msra.mxu0 0.0
      %615 = vmatpush.msra.mxu0 %v466
      %616 = vmatmul.f32.gmra.mxu0 %v414
      %v617 = vpop.f32.mrf.mxu0
      %v618 = vadd.f32 0.0, %v617
      %619 = vmatmul.f32.gmra.mxu0 %v417
      %v620 = vpop.f32.mrf.mxu0
      %v621 = vadd.f32 0.0, %v620
      %622 = vmatmul.f32.gmra.mxu0 %v420
      %v623 = vpop.f32.mrf.mxu0
      %v624 = vadd.f32 0.0, %v623
      %625 = vmatmul.f32.gmra.mxu0 %v423
      %v626 = vpop.f32.mrf.mxu0
      %v627 = vadd.f32 0.0, %v626
      %628 = vmatmul.f32.gmra.mxu0 %v426
      %v629 = vpop.f32.mrf.mxu0
      %v630 = vadd.f32 0.0, %v629
      %631 = vmatmul.f32.gmra.mxu0 %v429
      %v632 = vpop.f32.mrf.mxu0
      %v633 = vadd.f32 0.0, %v632
      %634 = vmatmul.f32.gmra.mxu0 %v432
      %v635 = vpop.f32.mrf.mxu0
      %v636 = vadd.f32 0.0, %v635
      %637 = vmatmul.f32.gmra.mxu0 %v435
      %v638 = vpop.f32.mrf.mxu0
      %v639 = vadd.f32 0.0, %v638
      %640 = vmatmul.f32.gmra.mxu0 %v438
      %v641 = vpop.f32.mrf.mxu0
      %v642 = vadd.f32 0.0, %v641
      %643 = vmatmul.f32.gmra.mxu0 %v441
      %v644 = vpop.f32.mrf.mxu0
      %v645 = vadd.f32 0.0, %v644
      %646 = vmatmul.f32.gmra.mxu0 %v444
      %v647 = vpop.f32.mrf.mxu0
      %v648 = vadd.f32 0.0, %v647
      %649 = vmatmul.f32.gmra.mxu0 %v447
      %v650 = vpop.f32.mrf.mxu0
      %v651 = vadd.f32 0.0, %v650
      %652 = vmatmul.f32.gmra.mxu0 %v450
      %v653 = vpop.f32.mrf.mxu0
      %v654 = vadd.f32 0.0, %v653
      %655 = vmatmul.f32.gmra.mxu0 %v453
      %v656 = vpop.f32.mrf.mxu0
      %v657 = vadd.f32 0.0, %v656
      %658 = vmatmul.f32.gmra.mxu0 %v456
      %v659 = vpop.f32.mrf.mxu0
      %v660 = vadd.f32 0.0, %v659
      %661 = vmatmul.f32.gmra.mxu0 %v459
      %v662 = vpop.f32.mrf.mxu0
      %v663 = vadd.f32 0.0, %v662
      %664 = vdwg.mxu0
      %665 = vmatpush.msra.mxu0 0.0
      %666 = vmatpush.msra.mxu0 0.0
      %667 = vmatpush.msra.mxu0 0.0
      %668 = vmatpush.msra.mxu0 0.0
      %669 = vmatpush.msra.mxu0 0.0
      %670 = vmatpush.msra.mxu0 0.0
      %671 = vmatpush.msra.mxu0 0.0
      %672 = vmatpush.msra.mxu0 0.0
      %673 = vmatpush.msra.mxu0 0.0
      %674 = vmatpush.msra.mxu0 0.0
      %675 = vmatpush.msra.mxu0 0.0
      %676 = vmatpush.msra.mxu0 0.0
      %677 = vmatpush.msra.mxu0 0.0
      %678 = vmatpush.msra.mxu0 0.0
      %679 = vmatpush.msra.mxu0 0.0
      %680 = vmatpush.msra.mxu0 %v468
      %681 = vmatmul.f32.gmra.mxu0 %v414
      %v682 = vpop.f32.mrf.mxu0
      %v683 = vadd.f32 0.0, %v682
      %684 = vmatmul.f32.gmra.mxu0 %v417
      %v685 = vpop.f32.mrf.mxu0
      %v686 = vadd.f32 0.0, %v685
      %687 = vmatmul.f32.gmra.mxu0 %v420
      %v688 = vpop.f32.mrf.mxu0
      %v689 = vadd.f32 0.0, %v688
      %690 = vmatmul.f32.gmra.mxu0 %v423
      %v691 = vpop.f32.mrf.mxu0
      %v692 = vadd.f32 0.0, %v691
      %693 = vmatmul.f32.gmra.mxu0 %v426
      %v694 = vpop.f32.mrf.mxu0
      %v695 = vadd.f32 0.0, %v694
      %696 = vmatmul.f32.gmra.mxu0 %v429
      %v697 = vpop.f32.mrf.mxu0
      %v698 = vadd.f32 0.0, %v697
      %699 = vmatmul.f32.gmra.mxu0 %v432
      %v700 = vpop.f32.mrf.mxu0
      %v701 = vadd.f32 0.0, %v700
      %702 = vmatmul.f32.gmra.mxu0 %v435
      %v703 = vpop.f32.mrf.mxu0
      %v704 = vadd.f32 0.0, %v703
      %705 = vmatmul.f32.gmra.mxu0 %v438
      %v706 = vpop.f32.mrf.mxu0
      %v707 = vadd.f32 0.0, %v706
      %708 = vmatmul.f32.gmra.mxu0 %v441
      %v709 = vpop.f32.mrf.mxu0
      %v710 = vadd.f32 0.0, %v709
      %711 = vmatmul.f32.gmra.mxu0 %v444
      %v712 = vpop.f32.mrf.mxu0
      %v713 = vadd.f32 0.0, %v712
      %714 = vmatmul.f32.gmra.mxu0 %v447
      %v715 = vpop.f32.mrf.mxu0
      %v716 = vadd.f32 0.0, %v715
      %717 = vmatmul.f32.gmra.mxu0 %v450
      %v718 = vpop.f32.mrf.mxu0
      %v719 = vadd.f32 0.0, %v718
      %720 = vmatmul.f32.gmra.mxu0 %v453
      %v721 = vpop.f32.mrf.mxu0
      %v722 = vadd.f32 0.0, %v721
      %723 = vmatmul.f32.gmra.mxu0 %v456
      %v724 = vpop.f32.mrf.mxu0
      %v725 = vadd.f32 0.0, %v724
      %726 = vmatmul.f32.gmra.mxu0 %v459
      %v727 = vpop.f32.mrf.mxu0
      %v728 = vadd.f32 0.0, %v727
      %729 = vdwg.mxu0
      %v730 = vmax.f32 %v488, %v553
      %v731 = vmax.f32 %v730, %v618
      %v732 = vmax.f32 %v731, %v683
      %733 = vmax.xlane.f32.xlu0 %v732
      %v734 = vpop.xlane.xlu0 %733
      %v735 = vmax.f32 %v491, %v556
      %v736 = vmax.f32 %v735, %v621
      %v737 = vmax.f32 %v736, %v686
      %738 = vmax.xlane.f32.xlu0 %v737
      %v739 = vpop.xlane.xlu0 %738
      %v740 = vmax.f32 %v494, %v559
      %v741 = vmax.f32 %v740, %v624
      %v742 = vmax.f32 %v741, %v689
      %743 = vmax.xlane.f32.xlu0 %v742
      %v744 = vpop.xlane.xlu0 %743
      %v745 = vmax.f32 %v497, %v562
      %v746 = vmax.f32 %v745, %v627
      %v747 = vmax.f32 %v746, %v692
      %748 = vmax.xlane.f32.xlu0 %v747
      %v749 = vpop.xlane.xlu0 %748
      %v750 = vmax.f32 %v500, %v565
      %v751 = vmax.f32 %v750, %v630
      %v752 = vmax.f32 %v751, %v695
      %753 = vmax.xlane.f32.xlu0 %v752
      %v754 = vpop.xlane.xlu0 %753
      %v755 = vmax.f32 %v503, %v568
      %v756 = vmax.f32 %v755, %v633
      %v757 = vmax.f32 %v756, %v698
      %758 = vmax.xlane.f32.xlu0 %v757
      %v759 = vpop.xlane.xlu0 %758
      %v760 = vmax.f32 %v506, %v571
      %v761 = vmax.f32 %v760, %v636
      %v762 = vmax.f32 %v761, %v701
      %763 = vmax.xlane.f32.xlu0 %v762
      %v764 = vpop.xlane.xlu0 %763
      %v765 = vmax.f32 %v509, %v574
      %v766 = vmax.f32 %v765, %v639
      %v767 = vmax.f32 %v766, %v704
      %768 = vmax.xlane.f32.xlu0 %v767
      %v769 = vpop.xlane.xlu0 %768
      %v770 = vmax.f32 %v512, %v577
      %v771 = vmax.f32 %v770, %v642
      %v772 = vmax.f32 %v771, %v707
      %773 = vmax.xlane.f32.xlu0 %v772
      %v774 = vpop.xlane.xlu0 %773
      %v775 = vmax.f32 %v515, %v580
      %v776 = vmax.f32 %v775, %v645
      %v777 = vmax.f32 %v776, %v710
      %778 = vmax.xlane.f32.xlu0 %v777
      %v779 = vpop.xlane.xlu0 %778
      %v780 = vmax.f32 %v518, %v583
      %v781 = vmax.f32 %v780, %v648
      %v782 = vmax.f32 %v781, %v713
      %783 = vmax.xlane.f32.xlu0 %v782
      %v784 = vpop.xlane.xlu0 %783
      %v785 = vmax.f32 %v521, %v586
      %v786 = vmax.f32 %v785, %v651
      %v787 = vmax.f32 %v786, %v716
      %788 = vmax.xlane.f32.xlu0 %v787
      %v789 = vpop.xlane.xlu0 %788
      %v790 = vmax.f32 %v524, %v589
      %v791 = vmax.f32 %v790, %v654
      %v792 = vmax.f32 %v791, %v719
      %793 = vmax.xlane.f32.xlu0 %v792
      %v794 = vpop.xlane.xlu0 %793
      %v795 = vmax.f32 %v527, %v592
      %v796 = vmax.f32 %v795, %v657
      %v797 = vmax.f32 %v796, %v722
      %798 = vmax.xlane.f32.xlu0 %v797
      %v799 = vpop.xlane.xlu0 %798
      %v800 = vmax.f32 %v530, %v595
      %v801 = vmax.f32 %v800, %v660
      %v802 = vmax.f32 %v801, %v725
      %803 = vmax.xlane.f32.xlu0 %v802
      %v804 = vpop.xlane.xlu0 %803
      %v805 = vmax.f32 %v533, %v598
      %v806 = vmax.f32 %v805, %v663
      %v807 = vmax.f32 %v806, %v728
      %808 = vmax.xlane.f32.xlu0 %v807
      %v809 = vpop.xlane.xlu0 %808
      %v810 = vsub.f32 %v488, %v734
      %v811 = vsub.f32 %v553, %v734
      %v812 = vsub.f32 %v618, %v734
      %v813 = vsub.f32 %v683, %v734
      %v814 = vsub.f32 %v491, %v739
      %v815 = vsub.f32 %v556, %v739
      %v816 = vsub.f32 %v621, %v739
      %v817 = vsub.f32 %v686, %v739
      %v818 = vsub.f32 %v494, %v744
      %v819 = vsub.f32 %v559, %v744
      %v820 = vsub.f32 %v624, %v744
      %v821 = vsub.f32 %v689, %v744
      %v822 = vsub.f32 %v497, %v749
      %v823 = vsub.f32 %v562, %v749
      %v824 = vsub.f32 %v627, %v749
      %v825 = vsub.f32 %v692, %v749
      %v826 = vsub.f32 %v500, %v754
      %v827 = vsub.f32 %v565, %v754
      %v828 = vsub.f32 %v630, %v754
      %v829 = vsub.f32 %v695, %v754
      %v830 = vsub.f32 %v503, %v759
      %v831 = vsub.f32 %v568, %v759
      %v832 = vsub.f32 %v633, %v759
      %v833 = vsub.f32 %v698, %v759
      %v834 = vsub.f32 %v506, %v764
      %v835 = vsub.f32 %v571, %v764
      %v836 = vsub.f32 %v636, %v764
      %v837 = vsub.f32 %v701, %v764
      %v838 = vsub.f32 %v509, %v769
      %v839 = vsub.f32 %v574, %v769
      %v840 = vsub.f32 %v639, %v769
      %v841 = vsub.f32 %v704, %v769
      %v842 = vsub.f32 %v512, %v774
      %v843 = vsub.f32 %v577, %v774
      %v844 = vsub.f32 %v642, %v774
      %v845 = vsub.f32 %v707, %v774
      %v846 = vsub.f32 %v515, %v779
      %v847 = vsub.f32 %v580, %v779
      %v848 = vsub.f32 %v645, %v779
      %v849 = vsub.f32 %v710, %v779
      %v850 = vsub.f32 %v518, %v784
      %v851 = vsub.f32 %v583, %v784
      %v852 = vsub.f32 %v648, %v784
      %v853 = vsub.f32 %v713, %v784
      %v854 = vsub.f32 %v521, %v789
      %v855 = vsub.f32 %v586, %v789
      %v856 = vsub.f32 %v651, %v789
      %v857 = vsub.f32 %v716, %v789
      %v858 = vsub.f32 %v524, %v794
      %v859 = vsub.f32 %v589, %v794
      %v860 = vsub.f32 %v654, %v794
      %v861 = vsub.f32 %v719, %v794
      %v862 = vsub.f32 %v527, %v799
      %v863 = vsub.f32 %v592, %v799
      %v864 = vsub.f32 %v657, %v799
      %v865 = vsub.f32 %v722, %v799
      %v866 = vsub.f32 %v530, %v804
      %v867 = vsub.f32 %v595, %v804
      %v868 = vsub.f32 %v660, %v804
      %v869 = vsub.f32 %v725, %v804
      %v870 = vsub.f32 %v533, %v809
      %v871 = vsub.f32 %v598, %v809
      %v872 = vsub.f32 %v663, %v809
      %v873 = vsub.f32 %v728, %v809
      %v874 = vmul.f32 %v810, 1.442695
      %v875 = vpow.pop %v874
      %v876 = vmul.f32 %v811, 1.442695
      %v877 = vpow.pop %v876
      %v878 = vmul.f32 %v812, 1.442695
      %v879 = vpow.pop %v878
      %v880 = vmul.f32 %v813, 1.442695
      %v881 = vpow.pop %v880
      %v882 = vmul.f32 %v814, 1.442695
      %v883 = vpow.pop %v882
      %v884 = vmul.f32 %v815, 1.442695
      %v885 = vpow.pop %v884
      %v886 = vmul.f32 %v816, 1.442695
      %v887 = vpow.pop %v886
      %v888 = vmul.f32 %v817, 1.442695
      %v889 = vpow.pop %v888
      %v890 = vmul.f32 %v818, 1.442695
      %v891 = vpow.pop %v890
      %v892 = vmul.f32 %v819, 1.442695
      %v893 = vpow.pop %v892
      %v894 = vmul.f32 %v820, 1.442695
      %v895 = vpow.pop %v894
      %v896 = vmul.f32 %v821, 1.442695
      %v897 = vpow.pop %v896
      %v898 = vmul.f32 %v822, 1.442695
      %v899 = vpow.pop %v898
      %v900 = vmul.f32 %v823, 1.442695
      %v901 = vpow.pop %v900
      %v902 = vmul.f32 %v824, 1.442695
      %v903 = vpow.pop %v902
      %v904 = vmul.f32 %v825, 1.442695
      %v905 = vpow.pop %v904
      %v906 = vmul.f32 %v826, 1.442695
      %v907 = vpow.pop %v906
      %v908 = vmul.f32 %v827, 1.442695
      %v909 = vpow.pop %v908
      %v910 = vmul.f32 %v828, 1.442695
      %v911 = vpow.pop %v910
      %v912 = vmul.f32 %v829, 1.442695
      %v913 = vpow.pop %v912
      %v914 = vmul.f32 %v830, 1.442695
      %v915 = vpow.pop %v914
      %v916 = vmul.f32 %v831, 1.442695
      %v917 = vpow.pop %v916
      %v918 = vmul.f32 %v832, 1.442695
      %v919 = vpow.pop %v918
      %v920 = vmul.f32 %v833, 1.442695
      %v921 = vpow.pop %v920
      %v922 = vmul.f32 %v834, 1.442695
      %v923 = vpow.pop %v922
      %v924 = vmul.f32 %v835, 1.442695
      %v925 = vpow.pop %v924
      %v926 = vmul.f32 %v836, 1.442695
      %v927 = vpow.pop %v926
      %v928 = vmul.f32 %v837, 1.442695
      %v929 = vpow.pop %v928
      %v930 = vmul.f32 %v838, 1.442695
      %v931 = vpow.pop %v930
      %v932 = vmul.f32 %v839, 1.442695
      %v933 = vpow.pop %v932
      %v934 = vmul.f32 %v840, 1.442695
      %v935 = vpow.pop %v934
      %v936 = vmul.f32 %v841, 1.442695
      %v937 = vpow.pop %v936
      %v938 = vmul.f32 %v842, 1.442695
      %v939 = vpow.pop %v938
      %v940 = vmul.f32 %v843, 1.442695
      %v941 = vpow.pop %v940
      %v942 = vmul.f32 %v844, 1.442695
      %v943 = vpow.pop %v942
      %v944 = vmul.f32 %v845, 1.442695
      %v945 = vpow.pop %v944
      %v946 = vmul.f32 %v846, 1.442695
      %v947 = vpow.pop %v946
      %v948 = vmul.f32 %v847, 1.442695
      %v949 = vpow.pop %v948
      %v950 = vmul.f32 %v848, 1.442695
      %v951 = vpow.pop %v950
      %v952 = vmul.f32 %v849, 1.442695
      %v953 = vpow.pop %v952
      %v954 = vmul.f32 %v850, 1.442695
      %v955 = vpow.pop %v954
      %v956 = vmul.f32 %v851, 1.442695
      %v957 = vpow.pop %v956
      %v958 = vmul.f32 %v852, 1.442695
      %v959 = vpow.pop %v958
      %v960 = vmul.f32 %v853, 1.442695
      %v961 = vpow.pop %v960
      %v962 = vmul.f32 %v854, 1.442695
      %v963 = vpow.pop %v962
      %v964 = vmul.f32 %v855, 1.442695
      %v965 = vpow.pop %v964
      %v966 = vmul.f32 %v856, 1.442695
      %v967 = vpow.pop %v966
      %v968 = vmul.f32 %v857, 1.442695
      %v969 = vpow.pop %v968
      %v970 = vmul.f32 %v858, 1.442695
      %v971 = vpow.pop %v970
      %v972 = vmul.f32 %v859, 1.442695
      %v973 = vpow.pop %v972
      %v974 = vmul.f32 %v860, 1.442695
      %v975 = vpow.pop %v974
      %v976 = vmul.f32 %v861, 1.442695
      %v977 = vpow.pop %v976
      %v978 = vmul.f32 %v862, 1.442695
      %v979 = vpow.pop %v978
      %v980 = vmul.f32 %v863, 1.442695
      %v981 = vpow.pop %v980
      %v982 = vmul.f32 %v864, 1.442695
      %v983 = vpow.pop %v982
      %v984 = vmul.f32 %v865, 1.442695
      %v985 = vpow.pop %v984
      %v986 = vmul.f32 %v866, 1.442695
      %v987 = vpow.pop %v986
      %v988 = vmul.f32 %v867, 1.442695
      %v989 = vpow.pop %v988
      %v990 = vmul.f32 %v868, 1.442695
      %v991 = vpow.pop %v990
      %v992 = vmul.f32 %v869, 1.442695
      %v993 = vpow.pop %v992
      %v994 = vmul.f32 %v870, 1.442695
      %v995 = vpow.pop %v994
      %v996 = vmul.f32 %v871, 1.442695
      %v997 = vpow.pop %v996
      %v998 = vmul.f32 %v872, 1.442695
      %v999 = vpow.pop %v998
      %v1000 = vmul.f32 %v873, 1.442695
      %v1001 = vpow.pop %v1000
      %1002 = vmatpush.xpose.msra.mxu0 %v995
      %1003 = vmatpush.xpose.msra.mxu0 %v987
      %1004 = vmatpush.xpose.msra.mxu0 %v979
      %1005 = vmatpush.xpose.msra.mxu0 %v971
      %1006 = vmatpush.xpose.msra.mxu0 %v963
      %1007 = vmatpush.xpose.msra.mxu0 %v955
      %1008 = vmatpush.xpose.msra.mxu0 %v947
      %1009 = vmatpush.xpose.msra.mxu0 %v939
      %1010 = vmatpush.xpose.msra.mxu0 %v931
      %1011 = vmatpush.xpose.msra.mxu0 %v923
      %1012 = vmatpush.xpose.msra.mxu0 %v915
      %1013 = vmatpush.xpose.msra.mxu0 %v907
      %1014 = vmatpush.xpose.msra.mxu0 %v899
      %1015 = vmatpush.xpose.msra.mxu0 %v891
      %1016 = vmatpush.xpose.msra.mxu0 %v883
      %1017 = vmatpush.xpose.msra.mxu0 %v875
      %1018 = vmatmul.f32.gmra.mxu0 %v367
      %v1019 = vpop.f32.mrf.mxu0
      %v1020 = vadd.f32 0.0, %v1019
      %1021 = vdwg.mxu0
      %1022 = vmatpush.xpose.msra.mxu0 %v997
      %1023 = vmatpush.xpose.msra.mxu0 %v989
      %1024 = vmatpush.xpose.msra.mxu0 %v981
      %1025 = vmatpush.xpose.msra.mxu0 %v973
      %1026 = vmatpush.xpose.msra.mxu0 %v965
      %1027 = vmatpush.xpose.msra.mxu0 %v957
      %1028 = vmatpush.xpose.msra.mxu0 %v949
      %1029 = vmatpush.xpose.msra.mxu0 %v941
      %1030 = vmatpush.xpose.msra.mxu0 %v933
      %1031 = vmatpush.xpose.msra.mxu0 %v925
      %1032 = vmatpush.xpose.msra.mxu0 %v917
      %1033 = vmatpush.xpose.msra.mxu0 %v909
      %1034 = vmatpush.xpose.msra.mxu0 %v901
      %1035 = vmatpush.xpose.msra.mxu0 %v893
      %1036 = vmatpush.xpose.msra.mxu0 %v885
      %1037 = vmatpush.xpose.msra.mxu0 %v877
      %1038 = vmatmul.f32.gmra.mxu0 %v368
      %v1039 = vpop.f32.mrf.mxu0
      %v1040 = vadd.f32 %v1020, %v1039
      %1041 = vdwg.mxu0
      %1042 = vmatpush.xpose.msra.mxu0 %v999
      %1043 = vmatpush.xpose.msra.mxu0 %v991
      %1044 = vmatpush.xpose.msra.mxu0 %v983
      %1045 = vmatpush.xpose.msra.mxu0 %v975
      %1046 = vmatpush.xpose.msra.mxu0 %v967
      %1047 = vmatpush.xpose.msra.mxu0 %v959
      %1048 = vmatpush.xpose.msra.mxu0 %v951
      %1049 = vmatpush.xpose.msra.mxu0 %v943
      %1050 = vmatpush.xpose.msra.mxu0 %v935
      %1051 = vmatpush.xpose.msra.mxu0 %v927
      %1052 = vmatpush.xpose.msra.mxu0 %v919
      %1053 = vmatpush.xpose.msra.mxu0 %v911
      %1054 = vmatpush.xpose.msra.mxu0 %v903
      %1055 = vmatpush.xpose.msra.mxu0 %v895
      %1056 = vmatpush.xpose.msra.mxu0 %v887
      %1057 = vmatpush.xpose.msra.mxu0 %v879
      %1058 = vmatmul.f32.gmra.mxu0 %v369
      %v1059 = vpop.f32.mrf.mxu0
      %v1060 = vadd.f32 %v1040, %v1059
      %1061 = vdwg.mxu0
      %1062 = vmatpush.xpose.msra.mxu0 %v1001
      %1063 = vmatpush.xpose.msra.mxu0 %v993
      %1064 = vmatpush.xpose.msra.mxu0 %v985
      %1065 = vmatpush.xpose.msra.mxu0 %v977
      %1066 = vmatpush.xpose.msra.mxu0 %v969
      %1067 = vmatpush.xpose.msra.mxu0 %v961
      %1068 = vmatpush.xpose.msra.mxu0 %v953
      %1069 = vmatpush.xpose.msra.mxu0 %v945
      %1070 = vmatpush.xpose.msra.mxu0 %v937
      %1071 = vmatpush.xpose.msra.mxu0 %v929
      %1072 = vmatpush.xpose.msra.mxu0 %v921
      %1073 = vmatpush.xpose.msra.mxu0 %v913
      %1074 = vmatpush.xpose.msra.mxu0 %v905
      %1075 = vmatpush.xpose.msra.mxu0 %v897
      %1076 = vmatpush.xpose.msra.mxu0 %v889
      %1077 = vmatpush.xpose.msra.mxu0 %v881
      %1078 = vmatmul.f32.gmra.mxu0 %v370
      %v1079 = vpop.f32.mrf.mxu0
      %v1080 = vadd.f32 %v1060, %v1079
      %1081 = vdwg.mxu0
      %v1082 = vrcp.pop %v1080
      %v1083 = vmul.f32 %v1080, %v1082
      %v1084 = vsub.f32 1.0, %v1083
      %v1085 = vmul.f32 %v1082, %v1084
      %v1086 = vadd.f32 %v1082, %v1085
      %vm1087 = vweird.f32 %v1080
      %vm1088 = vweird.f32 %v1082
      %vm1089 = vmor %vm1087, %vm1088
      %v1090 = vsel %vm1089, %v1082, %v1086
      %v1091 = vand.u32 2147483647, %v1080
      %vm1092 = vcmp.eq.f32.partialorder %v1091, 8.507059e+37
      %v1093 = vand.u32 %v1080, 2147483648
      %v1094 = vor.u32 1.1754944e-38, %v1093
      %v1095 = vsel %vm1092, %v1094, %v1090
      %v1096 = vperm.slane %v1095, 4
      %v1097 = vmul.f32 %v1080, %v1096
      %s1098 = smul.u32 %s24, 128
      %s1099 = sshra.s32 %s1098, 7
      %s1100 = sand.u32 %s1098, 127
      %s1101 = smul.u32 %s23, 4
      %s1102 = sadd.s32 %s1099, %s1101
      %s1103 = smul.addr %s1102, 4
      %s1104 = scalar_lea.vmem [#allocation2], %s1103
      %1105 = vst [vmem:[%s1104] sm:$0xf] %v1097
      %p1106 = scmp.eq.s32.totalorder %s23, 1
      %p1107 = scmp.eq.s32.totalorder %s24, 3
      %p1108 = pnand %p1106, %p1107
      %p1109 = pneg %p1108
      // Predicated region
      $region45: #{self_attention_forward.3} parent=43 // pred_check
        _
      $region46: #{self_attention_forward.3} parent=43 // pred_check_branch
        %1111 = sbr.rel (%p1108) target = $region48
      $region47: #{self_attention_forward.3} parent=43 // pred_region
        %v1112 = vld [vmem:[%s5] sm:$0xff]
        %v1113 = vld [vmem:[%s5 + $0x8] sm:$0xff]
        %v1114 = vld [vmem:[%s3] sm:$0xff]
        %v1115 = vld [vmem:[%s3 + $0x8] sm:$0xff]
        %v1116 = vld [vmem:[#allocation2] sm:$0xff]
        %1118 = vst [vmem:[#allocation1] ss:$2 sm:$0xff] %v1116
        %v1119 = vld.sshfl [vmem:[#allocation1] sm:$0xff pattern:$0x75316420]
        %v1120 = vld.sshfl [vmem:[#allocation1 + $0x8] sm:$0xff pattern:$0x75316420]
        %v1122 = vsel %vm412, %v1114, 0
        %v1125 = vsel %vm412, %v1115, 0
        %v1127 = vsel %vm461, %v1119, 0
        %v1129 = vsel %vm461, %v1120, 0
        %1131 = vmatpush.msra.mxu0 0.0
        %1132 = vmatpush.msra.mxu0 0.0
        %1133 = vmatpush.msra.mxu0 0.0
        %1134 = vmatpush.msra.mxu0 0.0
        %1135 = vmatpush.msra.mxu0 0.0
        %1136 = vmatpush.msra.mxu0 0.0
        %1137 = vmatpush.msra.mxu0 0.0
        %1138 = vmatpush.msra.mxu0 0.0
        %1139 = vmatpush.msra.mxu0 0.0
        %1140 = vmatpush.msra.mxu0 0.0
        %1141 = vmatpush.msra.mxu0 0.0
        %1142 = vmatpush.msra.mxu0 0.0
        %1143 = vmatpush.msra.mxu0 0.0
        %1144 = vmatpush.msra.mxu0 0.0
        %1145 = vmatpush.msra.mxu0 0.0
        %1146 = vmatpush.msra.mxu0 %v1127
        %1147 = vmatmul.f32.gmra.mxu0 %v1122
        %v1148 = vpop.f32.mrf.mxu0
        %v1149 = vadd.f32 0.0, %v1148
        %1150 = vmatmul.f32.gmra.mxu0 %v1125
        %v1151 = vpop.f32.mrf.mxu0
        %v1152 = vadd.f32 0.0, %v1151
        %1153 = vdwg.mxu0
        %1154 = vmatpush.msra.mxu0 0.0
        %1155 = vmatpush.msra.mxu0 0.0
        %1156 = vmatpush.msra.mxu0 0.0
        %1157 = vmatpush.msra.mxu0 0.0
        %1158 = vmatpush.msra.mxu0 0.0
        %1159 = vmatpush.msra.mxu0 0.0
        %1160 = vmatpush.msra.mxu0 0.0
        %1161 = vmatpush.msra.mxu0 0.0
        %1162 = vmatpush.msra.mxu0 0.0
        %1163 = vmatpush.msra.mxu0 0.0
        %1164 = vmatpush.msra.mxu0 0.0
        %1165 = vmatpush.msra.mxu0 0.0
        %1166 = vmatpush.msra.mxu0 0.0
        %1167 = vmatpush.msra.mxu0 0.0
        %1168 = vmatpush.msra.mxu0 0.0
        %1169 = vmatpush.msra.mxu0 %v1129
        %1170 = vmatmul.f32.gmra.mxu0 %v1122
        %v1171 = vpop.f32.mrf.mxu0
        %v1172 = vadd.f32 0.0, %v1171
        %1173 = vmatmul.f32.gmra.mxu0 %v1125
        %v1174 = vpop.f32.mrf.mxu0
        %v1175 = vadd.f32 0.0, %v1174
        %1176 = vdwg.mxu0
        %1178 = vset.pattern.permute.xlu0 0
        %1179 = vperm.xlu0 %1178, %v1112
        %v1180 = vpop.permute.xlu0 %1179
        %1183 = vset.pattern.permute.xlu0 0
        %1184 = vperm.xlu0 %1183, %v1113
        %v1185 = vpop.permute.xlu0 %1184
        %v1187 = vadd.f32 %v1180, %v1149
        %v1188 = vadd.f32 %v1180, %v1172
        %v1189 = vadd.f32 %v1185, %v1152
        %v1190 = vadd.f32 %v1185, %v1175
        %s1191 = scalar_lea.vmem %s3, 32
        %v1192 = vld [vmem:[%s1191] sm:$0xff]
        %v1193 = vld [vmem:[%s1191 + $0x8] sm:$0xff]
        %s1194 = scalar_lea.vmem [#allocation2], 16
        %v1195 = vld [vmem:[%s1194] sm:$0xff]
        %1197 = vst [vmem:[#allocation1] ss:$2 sm:$0xff] %v1195
        %v1198 = vld.sshfl [vmem:[#allocation1] sm:$0xff pattern:$0x75316420]
        %v1199 = vld.sshfl [vmem:[#allocation1 + $0x8] sm:$0xff pattern:$0x75316420]
        %v1201 = vsel %vm412, %v1192, 0
        %v1204 = vsel %vm412, %v1193, 0
        %v1206 = vsel %vm461, %v1198, 0
        %v1208 = vsel %vm461, %v1199, 0
        %1210 = vmatpush.msra.mxu0 0.0
        %1211 = vmatpush.msra.mxu0 0.0
        %1212 = vmatpush.msra.mxu0 0.0
        %1213 = vmatpush.msra.mxu0 0.0
        %1214 = vmatpush.msra.mxu0 0.0
        %1215 = vmatpush.msra.mxu0 0.0
        %1216 = vmatpush.msra.mxu0 0.0
        %1217 = vmatpush.msra.mxu0 0.0
        %1218 = vmatpush.msra.mxu0 0.0
        %1219 = vmatpush.msra.mxu0 0.0
        %1220 = vmatpush.msra.mxu0 0.0
        %1221 = vmatpush.msra.mxu0 0.0
        %1222 = vmatpush.msra.mxu0 0.0
        %1223 = vmatpush.msra.mxu0 0.0
        %1224 = vmatpush.msra.mxu0 0.0
        %1225 = vmatpush.msra.mxu0 %v1206
        %1226 = vmatmul.f32.gmra.mxu0 %v1201
        %v1227 = vpop.f32.mrf.mxu0
        %v1228 = vadd.f32 0.0, %v1227
        %1229 = vmatmul.f32.gmra.mxu0 %v1204
        %v1230 = vpop.f32.mrf.mxu0
        %v1231 = vadd.f32 0.0, %v1230
        %1232 = vdwg.mxu0
        %1233 = vmatpush.msra.mxu0 0.0
        %1234 = vmatpush.msra.mxu0 0.0
        %1235 = vmatpush.msra.mxu0 0.0
        %1236 = vmatpush.msra.mxu0 0.0
        %1237 = vmatpush.msra.mxu0 0.0
        %1238 = vmatpush.msra.mxu0 0.0
        %1239 = vmatpush.msra.mxu0 0.0
        %1240 = vmatpush.msra.mxu0 0.0
        %1241 = vmatpush.msra.mxu0 0.0
        %1242 = vmatpush.msra.mxu0 0.0
        %1243 = vmatpush.msra.mxu0 0.0
        %1244 = vmatpush.msra.mxu0 0.0
        %1245 = vmatpush.msra.mxu0 0.0
        %1246 = vmatpush.msra.mxu0 0.0
        %1247 = vmatpush.msra.mxu0 0.0
        %1248 = vmatpush.msra.mxu0 %v1208
        %1249 = vmatmul.f32.gmra.mxu0 %v1201
        %v1250 = vpop.f32.mrf.mxu0
        %v1251 = vadd.f32 0.0, %v1250
        %1252 = vmatmul.f32.gmra.mxu0 %v1204
        %v1253 = vpop.f32.mrf.mxu0
        %v1254 = vadd.f32 0.0, %v1253
        %1255 = vdwg.mxu0
        %v1256 = vadd.f32 %v1187, %v1228
        %v1257 = vadd.f32 %v1188, %v1251
        %v1258 = vadd.f32 %v1189, %v1231
        %v1259 = vadd.f32 %v1190, %v1254
        %s1260 = scalar_lea.vmem %s3, 16
        %v1261 = vld [vmem:[%s1260] sm:$0xff]
        %v1262 = vld [vmem:[%s1260 + $0x8] sm:$0xff]
        %v1263 = vld [vmem:[#allocation2 + $0x8] sm:$0xff]
        %1265 = vst [vmem:[#allocation1] ss:$2 sm:$0xff] %v1263
        %v1266 = vld.sshfl [vmem:[#allocation1] sm:$0xff pattern:$0x75316420]
        %v1267 = vld.sshfl [vmem:[#allocation1 + $0x8] sm:$0xff pattern:$0x75316420]
        %v1269 = vsel %vm412, %v1261, 0
        %v1272 = vsel %vm412, %v1262, 0
        %v1274 = vsel %vm461, %v1266, 0
        %v1276 = vsel %vm461, %v1267, 0
        %1278 = vmatpush.msra.mxu0 0.0
        %1279 = vmatpush.msra.mxu0 0.0
        %1280 = vmatpush.msra.mxu0 0.0
        %1281 = vmatpush.msra.mxu0 0.0
        %1282 = vmatpush.msra.mxu0 0.0
        %1283 = vmatpush.msra.mxu0 0.0
        %1284 = vmatpush.msra.mxu0 0.0
        %1285 = vmatpush.msra.mxu0 0.0
        %1286 = vmatpush.msra.mxu0 0.0
        %1287 = vmatpush.msra.mxu0 0.0
        %1288 = vmatpush.msra.mxu0 0.0
        %1289 = vmatpush.msra.mxu0 0.0
        %1290 = vmatpush.msra.mxu0 0.0
        %1291 = vmatpush.msra.mxu0 0.0
        %1292 = vmatpush.msra.mxu0 0.0
        %1293 = vmatpush.msra.mxu0 %v1274
        %1294 = vmatmul.f32.gmra.mxu0 %v1269
        %v1295 = vpop.f32.mrf.mxu0
        %v1296 = vadd.f32 0.0, %v1295
        %1297 = vmatmul.f32.gmra.mxu0 %v1272
        %v1298 = vpop.f32.mrf.mxu0
        %v1299 = vadd.f32 0.0, %v1298
        %1300 = vdwg.mxu0
        %1301 = vmatpush.msra.mxu0 0.0
        %1302 = vmatpush.msra.mxu0 0.0
        %1303 = vmatpush.msra.mxu0 0.0
        %1304 = vmatpush.msra.mxu0 0.0
        %1305 = vmatpush.msra.mxu0 0.0
        %1306 = vmatpush.msra.mxu0 0.0
        %1307 = vmatpush.msra.mxu0 0.0
        %1308 = vmatpush.msra.mxu0 0.0
        %1309 = vmatpush.msra.mxu0 0.0
        %1310 = vmatpush.msra.mxu0 0.0
        %1311 = vmatpush.msra.mxu0 0.0
        %1312 = vmatpush.msra.mxu0 0.0
        %1313 = vmatpush.msra.mxu0 0.0
        %1314 = vmatpush.msra.mxu0 0.0
        %1315 = vmatpush.msra.mxu0 0.0
        %1316 = vmatpush.msra.mxu0 %v1276
        %1317 = vmatmul.f32.gmra.mxu0 %v1269
        %v1318 = vpop.f32.mrf.mxu0
        %v1319 = vadd.f32 0.0, %v1318
        %1320 = vmatmul.f32.gmra.mxu0 %v1272
        %v1321 = vpop.f32.mrf.mxu0
        %v1322 = vadd.f32 0.0, %v1321
        %1323 = vdwg.mxu0
        %v1324 = vadd.f32 %v1256, %v1296
        %v1325 = vadd.f32 %v1257, %v1319
        %v1326 = vadd.f32 %v1258, %v1299
        %v1327 = vadd.f32 %v1259, %v1322
        %s1328 = scalar_lea.vmem %s3, 48
        %v1329 = vld [vmem:[%s1328] sm:$0xff]
        %v1330 = vld [vmem:[%s1328 + $0x8] sm:$0xff]
        %v1331 = vld [vmem:[%s1194 + $0x8] sm:$0xff]
        %1333 = vst [vmem:[#allocation1] ss:$2 sm:$0xff] %v1331
        %v1334 = vld.sshfl [vmem:[#allocation1] sm:$0xff pattern:$0x75316420]
        %v1335 = vld.sshfl [vmem:[#allocation1 + $0x8] sm:$0xff pattern:$0x75316420]
        %v1337 = vsel %vm412, %v1329, 0
        %v1340 = vsel %vm412, %v1330, 0
        %v1342 = vsel %vm461, %v1334, 0
        %v1344 = vsel %vm461, %v1335, 0
        %1346 = vmatpush.msra.mxu0 0.0
        %1347 = vmatpush.msra.mxu0 0.0
        %1348 = vmatpush.msra.mxu0 0.0
        %1349 = vmatpush.msra.mxu0 0.0
        %1350 = vmatpush.msra.mxu0 0.0
        %1351 = vmatpush.msra.mxu0 0.0
        %1352 = vmatpush.msra.mxu0 0.0
        %1353 = vmatpush.msra.mxu0 0.0
        %1354 = vmatpush.msra.mxu0 0.0
        %1355 = vmatpush.msra.mxu0 0.0
        %1356 = vmatpush.msra.mxu0 0.0
        %1357 = vmatpush.msra.mxu0 0.0
        %1358 = vmatpush.msra.mxu0 0.0
        %1359 = vmatpush.msra.mxu0 0.0
        %1360 = vmatpush.msra.mxu0 0.0
        %1361 = vmatpush.msra.mxu0 %v1342
        %1362 = vmatmul.f32.gmra.mxu0 %v1337
        %v1363 = vpop.f32.mrf.mxu0
        %v1364 = vadd.f32 0.0, %v1363
        %1365 = vmatmul.f32.gmra.mxu0 %v1340
        %v1366 = vpop.f32.mrf.mxu0
        %v1367 = vadd.f32 0.0, %v1366
        %1368 = vdwg.mxu0
        %1369 = vmatpush.msra.mxu0 0.0
        %1370 = vmatpush.msra.mxu0 0.0
        %1371 = vmatpush.msra.mxu0 0.0
        %1372 = vmatpush.msra.mxu0 0.0
        %1373 = vmatpush.msra.mxu0 0.0
        %1374 = vmatpush.msra.mxu0 0.0
        %1375 = vmatpush.msra.mxu0 0.0
        %1376 = vmatpush.msra.mxu0 0.0
        %1377 = vmatpush.msra.mxu0 0.0
        %1378 = vmatpush.msra.mxu0 0.0
        %1379 = vmatpush.msra.mxu0 0.0
        %1380 = vmatpush.msra.mxu0 0.0
        %1381 = vmatpush.msra.mxu0 0.0
        %1382 = vmatpush.msra.mxu0 0.0
        %1383 = vmatpush.msra.mxu0 0.0
        %1384 = vmatpush.msra.mxu0 %v1344
        %1385 = vmatmul.f32.gmra.mxu0 %v1337
        %v1386 = vpop.f32.mrf.mxu0
        %v1387 = vadd.f32 0.0, %v1386
        %1388 = vmatmul.f32.gmra.mxu0 %v1340
        %v1389 = vpop.f32.mrf.mxu0
        %v1390 = vadd.f32 0.0, %v1389
        %1391 = vdwg.mxu0
        %v1392 = vadd.f32 %v1324, %v1364
        %v1393 = vadd.f32 %v1325, %v1387
        %v1394 = vadd.f32 %v1326, %v1367
        %v1395 = vadd.f32 %v1327, %v1390
        %v1396 = vadd.f32 %v1392, %v1393
        %1397 = vadd.xlane.f32.xlu0 %v1396
        %v1398 = vpop.xlane.xlu0 %1397
        %v1399 = vadd.f32 %v1394, %v1395
        %1400 = vadd.xlane.f32.xlu0 %v1399
        %v1401 = vpop.xlane.xlu0 %1400
        %v1402 = vrcp.pop 256.0
        %v1403 = vmul.f32 256.0, %v1402
        %v1404 = vsub.f32 1.0, %v1403
        %v1405 = vmul.f32 %v1402, %v1404
        %v1406 = vadd.f32 %v1402, %v1405
        %vm1407 = vweird.f32 %v1402
        %v1408 = vsel %vm1407, %v1402, %v1406
        %v1409 = vmul.f32 %v1398, %v1408
        %v1410 = vmul.f32 %v1401, %v1408
        %v1411 = vmul.f32 %v1392, %v1392
        %v1412 = vmul.f32 %v1393, %v1393
        %v1413 = vmul.f32 %v1394, %v1394
        %v1414 = vmul.f32 %v1395, %v1395
        %v1415 = vadd.f32 %v1411, %v1412
        %1416 = vadd.xlane.f32.xlu0 %v1415
        %v1417 = vpop.xlane.xlu0 %1416
        %v1418 = vadd.f32 %v1413, %v1414
        %1419 = vadd.xlane.f32.xlu0 %v1418
        %v1420 = vpop.xlane.xlu0 %1419
        %v1421 = vmul.f32 %v1417, %v1408
        %v1422 = vmul.f32 %v1420, %v1408
        %v1423 = vmul.f32 %v1409, %v1409
        %v1424 = vmul.f32 %v1410, %v1410
        %v1425 = vsub.f32 %v1421, %v1423
        %v1426 = vsub.f32 %v1422, %v1424
        %v1427 = vsub.f32 %v1392, %v1409
        %v1428 = vsub.f32 %v1393, %v1409
        %v1429 = vsub.f32 %v1394, %v1410
        %v1430 = vsub.f32 %v1395, %v1410
        %v1431 = vadd.f32 %v1425, 1e-05
        %v1432 = vadd.f32 %v1426, 1e-05
        %v1433 = vrsqrt.pop %v1431
        %v1434 = vmul.f32 %v1433, %v1431
        %v1435 = vmul.f32 %v1434, %v1433
        %v1436 = vmul.f32 0.5, %v1435
        %v1437 = vsub.f32 1.5, %v1436
        %v1438 = vmul.f32 %v1433, %v1437
        %vm1439 = vweird.f32 %v1431
        %vm1440 = vweird.f32 %v1433
        %vm1441 = vmor %vm1439, %vm1440
        %v1442 = vsel %vm1441, %v1433, %v1438
        %v1443 = vrsqrt.pop %v1432
        %v1444 = vmul.f32 %v1443, %v1432
        %v1445 = vmul.f32 %v1444, %v1443
        %v1446 = vmul.f32 0.5, %v1445
        %v1447 = vsub.f32 1.5, %v1446
        %v1448 = vmul.f32 %v1443, %v1447
        %vm1449 = vweird.f32 %v1432
        %vm1450 = vweird.f32 %v1443
        %vm1451 = vmor %vm1449, %vm1450
        %v1452 = vsel %vm1451, %v1443, %v1448
        %v1453 = vmul.f32 %v1427, %v1442
        %v1454 = vmul.f32 %v1428, %v1442
        %v1455 = vmul.f32 %v1429, %v1452
        %v1456 = vmul.f32 %v1430, %v1452
        %v1457 = vld [vmem:[%s4] sm:$0xff]
        %v1458 = vld [vmem:[%s4 + $0x8] sm:$0xff]
        %vm1459 = vcmask 130048
        %v1461 = vsel %vm1459, %v1457, 0
        %v1464 = vsel %vm1459, %v1458, 0
        %1466 = vmatpush.msra.mxu0 0.0
        %1467 = vmatpush.msra.mxu0 0.0
        %1468 = vmatpush.msra.mxu0 0.0
        %1469 = vmatpush.msra.mxu0 0.0
        %1470 = vmatpush.msra.mxu0 0.0
        %1471 = vmatpush.msra.mxu0 0.0
        %1472 = vmatpush.msra.mxu0 0.0
        %1473 = vmatpush.msra.mxu0 0.0
        %1474 = vmatpush.msra.mxu0 0.0
        %1475 = vmatpush.msra.mxu0 0.0
        %1476 = vmatpush.msra.mxu0 0.0
        %1477 = vmatpush.msra.mxu0 0.0
        %1478 = vmatpush.msra.mxu0 0.0
        %1479 = vmatpush.msra.mxu0 0.0
        %1480 = vmatpush.msra.mxu0 %v1455
        %1481 = vmatpush.msra.mxu0 %v1453
        %1482 = vmatmul.f32.gmra.mxu0 %v1461
        %v1483 = vpop.f32.mrf.mxu0
        %v1484 = vadd.f32 %v1180, %v1483
        %1485 = vmatmul.f32.gmra.mxu0 %v1464
        %v1486 = vpop.f32.mrf.mxu0
        %v1487 = vadd.f32 %v1185, %v1486
        %1488 = vdwg.mxu0
        %1489 = vmatpush.msra.mxu0 0.0
        %1490 = vmatpush.msra.mxu0 0.0
        %1491 = vmatpush.msra.mxu0 0.0
        %1492 = vmatpush.msra.mxu0 0.0
        %1493 = vmatpush.msra.mxu0 0.0
        %1494 = vmatpush.msra.mxu0 0.0
        %1495 = vmatpush.msra.mxu0 0.0
        %1496 = vmatpush.msra.mxu0 0.0
        %1497 = vmatpush.msra.mxu0 0.0
        %1498 = vmatpush.msra.mxu0 0.0
        %1499 = vmatpush.msra.mxu0 0.0
        %1500 = vmatpush.msra.mxu0 0.0
        %1501 = vmatpush.msra.mxu0 0.0
        %1502 = vmatpush.msra.mxu0 0.0
        %1503 = vmatpush.msra.mxu0 %v1456
        %1504 = vmatpush.msra.mxu0 %v1454
        %1505 = vmatmul.f32.gmra.mxu0 %v1461
        %v1506 = vpop.f32.mrf.mxu0
        %v1507 = vadd.f32 %v1180, %v1506
        %1508 = vmatmul.f32.gmra.mxu0 %v1464
        %v1509 = vpop.f32.mrf.mxu0
        %v1510 = vadd.f32 %v1185, %v1509
        %1511 = vdwg.mxu0
        %1512 = vst [vmem:[%s363] sm:$0xff] %v1484
        %1513 = vst [vmem:[%s363 + $0x8] sm:$0xff] %v1507
        %1514 = vst [vmem:[%s363 + $0x10] sm:$0xff] %v1487
        %1515 = vst [vmem:[%s363 + $0x18] sm:$0xff] %v1510
      $region48: #{self_attention_forward.3} parent=43 // pred_fallthru
        _
      %p1516 = scmp.lt.s32.totalorder %s22, 1
      %s1517 = scalar_select %p1516, %s22, 1
      %s1518 = smul.addr %s1517, 4
      %s1519 = smul.addr %s1518, 8
      %s1520 = scalar_lea.vmem %s6, %s1519
      // Predicated region
      $region49: #{self_attention_forward.3} parent=43 // pred_check
        %p1521 = pneg %p203
      $region50: #{self_attention_forward.3} parent=43 // pred_check_branch
        %1523 = sbr.rel (%p1521) target = $region52
      $region51: #{self_attention_forward.3} parent=43 // pred_region
        _
      $region52: #{self_attention_forward.3} parent=43 // pred_fallthru
        _
    $region44: #{self_attention_forward.3} parent=5 // pred_fallthru
      _
    %p1524 = scmp.le.s32.totalorder 2, %s12
    // Predicated region
    $region53: #{self_attention_forward.3} parent=5 // pred_check
      %p1525 = pneg %p1524
    $region54: #{self_attention_forward.3} parent=5 // pred_check_branch
      %1527 = sbr.rel (%p1525) target = $region56
    $region55: #{self_attention_forward.3} parent=5 // pred_region
      %s1528 = ssub.s32 %s12, 2
      // Predicated region
      $region57: #{self_attention_forward.3} parent=55 // pred_check
        %p1529 = pneg %p209
      $region58: #{self_attention_forward.3} parent=55 // pred_check_branch
        %1531 = sbr.rel (%p1529) target = $region60
      $region59: #{self_attention_forward.3} parent=55 // pred_region
        %p1532 = scmp.lt.s32.totalorder %s25, 1
        %s1533 = scalar_select %p1532, %s25, 1
        %s1534 = smul.addr %s1533, 4
        %s1535 = smul.addr %s1534, 8
        %s1536 = scalar_lea.vmem %s6, %s1535
      $region60: #{self_attention_forward.3} parent=55 // pred_fallthru
        _
    $region56: #{self_attention_forward.3} parent=5 // pred_fallthru
      _
  $region6: #{self_attention_forward.3} parent=0 // loop_footer
    %s16 = sadd.s32 1, %s12
  $region7: #{self_attention_forward.3} parent=0 // loop_footer_branch
    %11 = sbr.rel target = $region3
  $region8: #{self_attention_forward.3} parent=0 // loop_exit
    _

</llo_original>
